<compile_context>
chip_gen: v7x
topology: tpu7x:2x2x1
jax: 0.10.0
libtpu: 0.0.40
codegen_flags: <defaults>
</compile_context>

<pallas_src>
import functools

import jax
import jax.numpy as jnp
from jax.experimental import pallas as pl
from jax.experimental.pallas import tpu as pltpu


def _mha_kernel(q_ref, k_ref, v_ref,
                wq_ref, wk_ref, wv_ref, wfc_ref,
                gamma_ref, beta_ref,
                out_ref, attn_ref,
                kp_ref, vp_ref,
                *, n_head, d_k, d_v, inv_temp, eps):
    Bt, Tq, D = q_ref.shape
    Lk = k_ref.shape[1]
    d_model = wfc_ref.shape[1]

    # --- K / V projections: identical for every query tile of this batch
    # block, so compute them once (first qi step) into VMEM scratch and reuse.
    # The k/v input blocks only change with the slow (batch) grid axis, so the
    # pipeline does not re-DMA them across qi either.
    @pl.when(pl.program_id(1) == 0)
    def _():
        k2 = k_ref[...].reshape(Bt * Lk, D)
        v2 = v_ref[...].reshape(Bt * Lk, D)
        kp_ref[...] = jnp.dot(k2, wk_ref[...], preferred_element_type=jnp.float32)
        vp_ref[...] = jnp.dot(v2, wv_ref[...], preferred_element_type=jnp.float32)

    # --- Q projection for this query tile (fat 2-D matmul over (Bt*Tq, D)).
    # Temperature applied to the projected Q (cheap VPU mul) rather than folded
    # into the weights, so rounding matches the reference at any matmul precision.
    q2 = q_ref[...].reshape(Bt * Tq, D)
    qp = jnp.dot(q2, wq_ref[...], preferred_element_type=jnp.float32) * inv_temp

    qp3 = qp.reshape(Bt, Tq, n_head * d_k)
    kp3 = kp_ref[...].reshape(Bt, Lk, n_head * d_k)
    vp3 = vp_ref[...].reshape(Bt, Lk, n_head * d_v)

    attn_sum = jnp.zeros((Bt, Tq, Lk), dtype=jnp.float32)
    ctx_heads = []
    # Static loop over heads (n_head is small); batched-over-Bt einsums keep a
    # single batch dim, which Mosaic lowers without any in-kernel transposes.
    # TODO(synk): for large n_head, switch to lax.fori_loop(..., unroll=True)
    # with VMEM scratch accumulators to bound vreg live ranges.
    for h in range(n_head):
        qh = qp3[:, :, h * d_k:(h + 1) * d_k]              # (Bt, Tq, d_k)
        kh = kp3[:, :, h * d_k:(h + 1) * d_k]              # (Bt, Lk, d_k)
        vh = vp3[:, :, h * d_v:(h + 1) * d_v]              # (Bt, Lk, d_v)

        scores = jnp.einsum('bqd,bkd->bqk', qh, kh,
                            preferred_element_type=jnp.float32)   # (Bt, Tq, Lk)
        m = jnp.max(scores, axis=-1, keepdims=True)
        p = jnp.exp(scores - m)
        denom = jnp.sum(p, axis=-1, keepdims=True)
        attn = p / denom                                   # exact: map is user-visible
        attn_sum = attn_sum + attn

        ctx_heads.append(jnp.einsum('bqk,bkd->bqd', attn, vh,
                                    preferred_element_type=jnp.float32))

    # --- One fused fc matmul over the full n_head*d_v contraction.
    ctx = jnp.concatenate(ctx_heads, axis=-1).reshape(Bt * Tq, n_head * d_v)
    o = jnp.dot(ctx, wfc_ref[...], preferred_element_type=jnp.float32)

    # Dropout p=0 -> identity.  LayerNorm over d_model (biased var, eps=1e-6).
    mean = jnp.mean(o, axis=-1, keepdims=True)
    var = jnp.mean((o - mean) ** 2, axis=-1, keepdims=True)
    y = (o - mean) * jax.lax.rsqrt(var + jnp.float32(eps))
    y = y * gamma_ref[...] + beta_ref[...]

    out_ref[...] = y.reshape(Bt, Tq, d_model).astype(out_ref.dtype)
    attn_ref[...] = (attn_sum * jnp.float32(1.0 / n_head)).astype(attn_ref.dtype)


def _divisor_tile(n, max_tile, multiple_of=1):
    """Largest divisor of n that is <= max_tile (preferring a given multiple).

    Falls back to the full extent (always a legal block shape) if no suitable
    divisor exists; the caller's VMEM-budget shrink loop then has the final say.
    """
    if n <= max_tile:
        return n
    for t in range(max_tile, 0, -1):
        if n % t == 0 and t % multiple_of == 0:
            return t
    return n


def _estimate_vmem_bytes(Bt, Tq, Lk, d_model, hdk, hdv, itemsize):
    """Rough VMEM footprint: double-buffered blocks + weights + scratch + live values."""
    in_blocks = 2 * (Bt * Tq * d_model + 2 * Bt * Lk * d_model)      # q, k, v
    out_blocks = 2 * (Bt * Tq * d_model + Bt * Tq * Lk)              # out, attn
    weights = d_model * hdk * 2 + d_model * hdv + hdv * d_model + 2 * d_model
    scratch = Bt * Lk * (hdk + hdv)                                   # kp / vp cache
    live = Bt * Tq * (3 * Lk + hdk + 2 * hdv + 2 * d_model)           # scores/p/attn + qp + ctx + o
    return int((in_blocks + out_blocks + scratch + live) * itemsize + weights * 4)


def mha_for_index(q, k, v, params, *, n_head, d_k, d_v, eps=1e-6,
                  max_batch_block=4, max_q_block=256,
                  attn_dtype=None, vmem_cap_bytes=64 * 1024 * 1024):
    """Pallas implementation of MultiHeadAttention_for_index.forward (mask=None)."""
    B, Lq, d_model = q.shape
    Lk = k.shape[1]
    hdk, hdv = n_head * d_k, n_head * d_v

    wq, wk, wv, wfc, gamma, beta = params

    # One-time layout plumbing outside the kernel (no in-kernel transposes).
    wq_t = wq.T                        # (d_model, H*d_k)
    wk_t = wk.T                        # (d_model, H*d_k)
    wv_t = wv.T                        # (d_model, H*d_v)
    wfc_t = wfc.T                      # (H*d_v, d_model)
    gamma2 = gamma.reshape(1, d_model)
    beta2 = beta.reshape(1, d_model)

    if attn_dtype is None:
        # TODO(synk): at production shapes emit the attention map in bf16 (or
        # make it optional) — the (B, Lq, Lk) map dominates HBM writeback.
        attn_dtype = q.dtype

    # Tile selection: keep >=2 batch blocks when possible (both v7x TCs get
    # work), then shrink Tq / Bt until the explicit VMEM estimate fits the cap
    # (64 MiB is the v7x-per-TC physical budget; v6e/v5e have more).
    Bt = _divisor_tile(B, min(max_batch_block, max(1, B // 2)))
    Tq = _divisor_tile(Lq, max_q_block, multiple_of=8)
    itemsize = jnp.dtype(q.dtype).itemsize

    def est(bt, tq):
        return _estimate_vmem_bytes(bt, tq, Lk, d_model, hdk, hdv, itemsize)

    while est(Bt, Tq) > vmem_cap_bytes and Tq % 2 == 0 and Tq > 8:
        Tq //= 2
    while est(Bt, Tq) > vmem_cap_bytes and Bt % 2 == 0 and Bt > 1:
        Bt //= 2

    grid = (B // Bt, Lq // Tq)
    vmem_limit = int(min(max(2 * est(Bt, Tq), 32 * 1024 * 1024), 100 * 1024 * 1024))

    kernel = functools.partial(_mha_kernel, n_head=n_head, d_k=d_k, d_v=d_v,
                               inv_temp=float(1.0 / (d_k ** 0.5)), eps=eps)

    def w_spec(shape):
        return pl.BlockSpec(shape, lambda b, qi: (0,) * len(shape))

    flops = int(2 * B * (Lq * d_model * hdk
                         + Lk * d_model * (hdk + hdv)
                         + n_head * Lq * Lk * (d_k + d_v)
                         + Lq * hdv * d_model))
    transcendentals = int(B * n_head * Lq * Lk)
    bytes_accessed = int(itemsize * (B * (Lq + 2 * Lk) * d_model          # q,k,v
                                     + B * Lq * d_model + B * Lq * Lk)    # out, attn
                         + 4 * (2 * d_model * hdk + 2 * d_model * hdv + 2 * d_model))

    out, attn = pl.pallas_call(
        kernel,
        out_shape=(
            jax.ShapeDtypeStruct((B, Lq, d_model), q.dtype),
            # NOTE: at production shapes keep Lk a multiple of 128 so the attn
            # store is lane-dense (unmasked vst).
            jax.ShapeDtypeStruct((B, Lq, Lk), attn_dtype),
        ),
        grid_spec=pltpu.PrefetchScalarGridSpec(
            num_scalar_prefetch=0,
            grid=grid,
            in_specs=[
                pl.BlockSpec((Bt, Tq, d_model), lambda b, qi: (b, qi, 0)),  # q
                pl.BlockSpec((Bt, Lk, d_model), lambda b, qi: (b, 0, 0)),   # k
                pl.BlockSpec((Bt, Lk, d_model), lambda b, qi: (b, 0, 0)),   # v
                w_spec(wq_t.shape),
                w_spec(wk_t.shape),
                w_spec(wv_t.shape),
                w_spec(wfc_t.shape),
                w_spec(gamma2.shape),
                w_spec(beta2.shape),
            ],
            out_specs=[
                pl.BlockSpec((Bt, Tq, d_model), lambda b, qi: (b, qi, 0)),
                pl.BlockSpec((Bt, Tq, Lk), lambda b, qi: (b, qi, 0)),
            ],
            scratch_shapes=[
                pltpu.VMEM((Bt * Lk, hdk), jnp.float32),   # cached K projection
                pltpu.VMEM((Bt * Lk, hdv), jnp.float32),   # cached V projection
            ],
        ),
        compiler_params=pltpu.CompilerParams(
            # qi must be "arbitrary": K/V-projection scratch is written at
            # qi == 0 and reused by later query tiles of the same batch block.
            dimension_semantics=("parallel", "arbitrary"),
            vmem_limit_bytes=vmem_limit,
        ),
        cost_estimate=pl.CostEstimate(flops=flops,
                                      transcendentals=transcendentals,
                                      bytes_accessed=bytes_accessed),
    )(q, k, v, wq_t, wk_t, wv_t, wfc_t, gamma2, beta2)
    return out, attn


def reference_forward(q, k, v, params, *, n_head, d_k, d_v, eps=1e-6):
    """Pure-JAX reference mirroring the PyTorch module (mask=None, dropout=0)."""
    wq, wk, wv, wfc, gamma, beta = params
    B, Lq, D = q.shape
    Lk = k.shape[1]

    qp = (q @ wq.T).reshape(B, Lq, n_head, d_k).transpose(0, 2, 1, 3)
    kp = (k @ wk.T).reshape(B, Lk, n_head, d_k).transpose(0, 2, 1, 3)
    vp = (v @ wv.T).reshape(B, Lk, n_head, d_v).transpose(0, 2, 1, 3)

    scores = jnp.einsum("bhqd,bhkd->bhqk", qp / (d_k ** 0.5), kp)
    attn = jax.nn.softmax(scores, axis=-1)
    ctx = jnp.einsum("bhqk,bhkd->bhqd", attn, vp)
    ctx = ctx.transpose(0, 2, 1, 3).reshape(B, Lq, n_head * d_v)
    o = ctx @ wfc.T

    mean = jnp.mean(o, axis=-1, keepdims=True)
    var = jnp.mean((o - mean) ** 2, axis=-1, keepdims=True)
    o = (o - mean) / jnp.sqrt(var + eps) * gamma + beta
    return o, jnp.mean(attn, axis=1)


if __name__ == "__main__":
    # Small config consistent with the module:
    #   n_head=4, d_k=d_v=8, d_model=32 (so eye_ on w_ks/w_vs is a square identity).
    B, L = 2, 8
    n_head, d_k, d_v = 4, 8, 8
    d_model = 32

    key = jax.random.PRNGKey(0)
    kq, kk, kv, kwq, kwfc = jax.random.split(key, 5)

    q = jax.random.normal(kq, (B, L, d_model), dtype=jnp.float32)
    k = jax.random.normal(kk, (B, L, d_model), dtype=jnp.float32)
    v = jax.random.normal(kv, (B, L, d_model), dtype=jnp.float32)

    # Deterministic parameter init:
    #  - w_qs, fc: uniform(-1/sqrt(fan_in), 1/sqrt(fan_in)) like nn.Linear default
    #  - w_ks, w_vs: identity (nn.init.eye_)
    #  - LayerNorm: gamma=1, beta=0
    bound_q = 1.0 / (d_model ** 0.5)
    bound_fc = 1.0 / ((n_head * d_v) ** 0.5)
    wq = jax.random.uniform(kwq, (n_head * d_k, d_model), jnp.float32,
                            -bound_q, bound_q)
    wk = jnp.eye(n_head * d_k, d_model, dtype=jnp.float32)
    wv = jnp.eye(n_head * d_v, d_model, dtype=jnp.float32)
    wfc = jax.random.uniform(kwfc, (d_model, n_head * d_v), jnp.float32,
                             -bound_fc, bound_fc)
    gamma = jnp.ones((d_model,), jnp.float32)
    beta = jnp.zeros((d_model,), jnp.float32)

    params = (wq, wk, wv, wfc, gamma, beta)

    out, attn = mha_for_index(q, k, v, params, n_head=n_head, d_k=d_k, d_v=d_v)
    out = jax.block_until_ready(out)
    attn = jax.block_until_ready(attn)

    ref_out, ref_attn = reference_forward(q, k, v, params,
                                          n_head=n_head, d_k=d_k, d_v=d_v)

    assert out.shape == (B, L, d_model) and attn.shape == (B, L, L)
    # Tolerance covers the TPU MXU's default single-pass bf16 matmul precision
    # when the kernel is compiled through Mosaic (vs. XLA for the reference);
    # in interpret mode or at HIGHEST precision the difference is ~1e-6.
    assert jnp.allclose(out, ref_out, atol=2e-2, rtol=2e-2)
    assert jnp.allclose(attn, ref_attn, atol=2e-2, rtol=2e-2)

    print("KERNEL_OK")
</pallas_src>

<mosaic_0001>
module attributes {stable_mosaic.version = 11 : i64} {
  func.func @_mha_kernel(%arg0: i32, %arg1: i32, %arg2: memref<1x8x32xf32, #tpu.memory_space<vmem>>, %arg3: memref<1x8x32xf32, #tpu.memory_space<vmem>>, %arg4: memref<1x8x32xf32, #tpu.memory_space<vmem>>, %arg5: memref<32x32xf32, #tpu.memory_space<vmem>>, %arg6: memref<32x32xf32, #tpu.memory_space<vmem>>, %arg7: memref<32x32xf32, #tpu.memory_space<vmem>>, %arg8: memref<32x32xf32, #tpu.memory_space<vmem>>, %arg9: memref<1x32xf32, #tpu.memory_space<vmem>>, %arg10: memref<1x32xf32, #tpu.memory_space<vmem>>, %arg11: memref<1x8x32xf32, #tpu.memory_space<vmem>>, %arg12: memref<1x8x8xf32, #tpu.memory_space<vmem>>, %arg13: memref<8x32xf32, #tpu.memory_space<vmem>>, %arg14: memref<8x32xf32, #tpu.memory_space<vmem>>) attributes {dimension_semantics = [#tpu.dimension_semantics<parallel>, #tpu.dimension_semantics<arbitrary>], iteration_bounds = array<i64: 2, 1>, scalar_prefetch = 0 : i64, scratch_operands = 2 : i64, tpu.core_type = #tpu.core_type<tc>, window_params = [{transform_indices = @transform_0, window_bounds = array<i64: 1, 8, 32>}, {transform_indices = @transform_1, window_bounds = array<i64: 1, 8, 32>}, {transform_indices = @transform_2, window_bounds = array<i64: 1, 8, 32>}, {pipeline_mode = #tpu.pipeline_mode<synchronous>, transform_indices = @transform_3, window_bounds = array<i64: 32, 32>}, {pipeline_mode = #tpu.pipeline_mode<synchronous>, transform_indices = @transform_4, window_bounds = array<i64: 32, 32>}, {pipeline_mode = #tpu.pipeline_mode<synchronous>, transform_indices = @transform_5, window_bounds = array<i64: 32, 32>}, {pipeline_mode = #tpu.pipeline_mode<synchronous>, transform_indices = @transform_6, window_bounds = array<i64: 32, 32>}, {pipeline_mode = #tpu.pipeline_mode<synchronous>, transform_indices = @transform_7, window_bounds = array<i64: 1, 32>}, {pipeline_mode = #tpu.pipeline_mode<synchronous>, transform_indices = @transform_8, window_bounds = array<i64: 1, 32>}, {transform_indices = @transform_9, window_bounds = array<i64: 1, 8, 32>}, {transform_indices = @transform_10, window_bounds = array<i64: 1, 8, 8>}]} {
    %c0_i32 = arith.constant 0 : i32
    %0 = arith.cmpi eq, %arg1, %c0_i32 : i32
    %1 = arith.extui %0 : i1 to i32
    %c0_i32_0 = arith.constant 0 : i32
    %2 = arith.cmpi ne, %1, %c0_i32_0 : i32
    scf.if %2 {
      %c0_46 = arith.constant 0 : index
      %c0_47 = arith.constant 0 : index
      %c0_48 = arith.constant 0 : index
      %108 = vector.load %arg3[%c0_46, %c0_47, %c0_48] : memref<1x8x32xf32, #tpu.memory_space<vmem>>, vector<1x8x32xf32>
      %109 = vector.shape_cast %108 : vector<1x8x32xf32> to vector<8x32xf32>
      %c0_49 = arith.constant 0 : index
      %c0_50 = arith.constant 0 : index
      %c0_51 = arith.constant 0 : index
      %110 = vector.load %arg4[%c0_49, %c0_50, %c0_51] : memref<1x8x32xf32, #tpu.memory_space<vmem>>, vector<1x8x32xf32>
      %111 = vector.shape_cast %110 : vector<1x8x32xf32> to vector<8x32xf32>
      %c0_52 = arith.constant 0 : index
      %c0_53 = arith.constant 0 : index
      %112 = vector.load %arg6[%c0_52, %c0_53] : memref<32x32xf32, #tpu.memory_space<vmem>>, vector<32x32xf32>
      %cst_54 = arith.constant dense<0.000000e+00> : vector<8x32xf32>
      %113 = tpu.matmul %109, %112, %cst_54 {dimension_numbers = #tpu.dot_dimension_numbers<[1], [0], [0], [1], [0, 0, 1, 1], [], []>} : vector<8x32xf32>, vector<32x32xf32>, vector<8x32xf32> -> vector<8x32xf32>
      %c0_55 = arith.constant 0 : index
      %c0_56 = arith.constant 0 : index
      %114 = vector.load %arg13[%c0_55, %c0_56] : memref<8x32xf32, #tpu.memory_space<vmem>>, vector<8x32xf32>
      tpu.vector_store %arg13[%c0_55, %c0_56], %113 {strides = array<i32>} : memref<8x32xf32, #tpu.memory_space<vmem>>, vector<8x32xf32>,
      %c0_57 = arith.constant 0 : index
      %c0_58 = arith.constant 0 : index
      %115 = vector.load %arg7[%c0_57, %c0_58] : memref<32x32xf32, #tpu.memory_space<vmem>>, vector<32x32xf32>
      %cst_59 = arith.constant dense<0.000000e+00> : vector<8x32xf32>
      %116 = tpu.matmul %111, %115, %cst_59 {dimension_numbers = #tpu.dot_dimension_numbers<[1], [0], [0], [1], [0, 0, 1, 1], [], []>} : vector<8x32xf32>, vector<32x32xf32>, vector<8x32xf32> -> vector<8x32xf32>
      %c0_60 = arith.constant 0 : index
      %c0_61 = arith.constant 0 : index
      %117 = vector.load %arg14[%c0_60, %c0_61] : memref<8x32xf32, #tpu.memory_space<vmem>>, vector<8x32xf32>
      tpu.vector_store %arg14[%c0_60, %c0_61], %116 {strides = array<i32>} : memref<8x32xf32, #tpu.memory_space<vmem>>, vector<8x32xf32>,
    } else {
    }
    %c0 = arith.constant 0 : index
    %c0_1 = arith.constant 0 : index
    %c0_2 = arith.constant 0 : index
    %3 = vector.load %arg2[%c0, %c0_1, %c0_2] : memref<1x8x32xf32, #tpu.memory_space<vmem>>, vector<1x8x32xf32>
    %4 = vector.shape_cast %3 : vector<1x8x32xf32> to vector<8x32xf32>
    %c0_3 = arith.constant 0 : index
    %c0_4 = arith.constant 0 : index
    %5 = vector.load %arg5[%c0_3, %c0_4] : memref<32x32xf32, #tpu.memory_space<vmem>>, vector<32x32xf32>
    %cst = arith.constant dense<0.000000e+00> : vector<8x32xf32>
    %6 = tpu.matmul %4, %5, %cst {dimension_numbers = #tpu.dot_dimension_numbers<[1], [0], [0], [1], [0, 0, 1, 1], [], []>} : vector<8x32xf32>, vector<32x32xf32>, vector<8x32xf32> -> vector<8x32xf32>
    %cst_5 = arith.constant 0.353553385 : f32
    %7 = vector.broadcast %cst_5 : f32 to vector<8x32xf32>
    %8 = arith.mulf %6, %7 : vector<8x32xf32>
    %9 = vector.shape_cast %8 : vector<8x32xf32> to vector<1x8x32xf32>
    %c0_6 = arith.constant 0 : index
    %c0_7 = arith.constant 0 : index
    %10 = vector.load %arg13[%c0_6, %c0_7] : memref<8x32xf32, #tpu.memory_space<vmem>>, vector<8x32xf32>
    %11 = vector.shape_cast %10 : vector<8x32xf32> to vector<1x8x32xf32>
    %c0_8 = arith.constant 0 : index
    %c0_9 = arith.constant 0 : index
    %12 = vector.load %arg14[%c0_8, %c0_9] : memref<8x32xf32, #tpu.memory_space<vmem>>, vector<8x32xf32>
    %13 = vector.shape_cast %12 : vector<8x32xf32> to vector<1x8x32xf32>
    %cst_10 = arith.constant 0.000000e+00 : f32
    %14 = vector.broadcast %cst_10 : f32 to vector<1x8x8xf32>
    %15 = vector.extract_strided_slice %9 {offsets = [0, 0, 0], sizes = [1, 8, 8], strides = [1, 1, 1]} : vector<1x8x32xf32> to vector<1x8x8xf32>
    %16 = vector.extract_strided_slice %11 {offsets = [0, 0, 0], sizes = [1, 8, 8], strides = [1, 1, 1]} : vector<1x8x32xf32> to vector<1x8x8xf32>
    %17 = vector.extract_strided_slice %13 {offsets = [0, 0, 0], sizes = [1, 8, 8], strides = [1, 1, 1]} : vector<1x8x32xf32> to vector<1x8x8xf32>
    "tpu.trace_start"() <{level = 10 : i32, message = "bqd,bkd->bqk"}> : () -> ()
    %cst_11 = arith.constant dense<0.000000e+00> : vector<1x8x8xf32>
    %18 = tpu.matmul %15, %16, %cst_11 {dimension_numbers = #tpu.dot_dimension_numbers<[2], [2], [1], [1], [0, 0, 0, 1, 1, 1], [0], [0]>} : vector<1x8x8xf32>, vector<1x8x8xf32>, vector<1x8x8xf32> -> vector<1x8x8xf32>
    "tpu.trace_stop"() : () -> ()
    %cst_12 = arith.constant dense<0xFF800000> : vector<1x8xf32>
    %19 = vector.multi_reduction <maximumf>, %18, %cst_12 [2] : vector<1x8x8xf32> to vector<1x8xf32>
    %20 = vector.shape_cast %19 : vector<1x8xf32> to vector<1x8x1xf32>
    %21 = vector.broadcast %20 : vector<1x8x1xf32> to vector<1x8x8xf32>
    %22 = arith.subf %18, %21 : vector<1x8x8xf32>
    %23 = math.exp %22 : vector<1x8x8xf32>
    %cst_13 = arith.constant dense<0.000000e+00> : vector<1x8xf32>
    %24 = vector.multi_reduction <add>, %23, %cst_13 [2] : vector<1x8x8xf32> to vector<1x8xf32>
    %25 = vector.shape_cast %24 : vector<1x8xf32> to vector<1x8x1xf32>
    %26 = vector.broadcast %25 : vector<1x8x1xf32> to vector<1x8x8xf32>
    %27 = arith.divf %23, %26 : vector<1x8x8xf32>
    %28 = arith.addf %14, %27 : vector<1x8x8xf32>
    "tpu.trace_start"() <{level = 10 : i32, message = "bqk,bkd->bqd"}> : () -> ()
    %cst_14 = arith.constant dense<0.000000e+00> : vector<1x8x8xf32>
    %29 = tpu.matmul %27, %17, %cst_14 {dimension_numbers = #tpu.dot_dimension_numbers<[2], [1], [1], [2], [0, 0, 0, 1, 1, 2], [0], [0]>} : vector<1x8x8xf32>, vector<1x8x8xf32>, vector<1x8x8xf32> -> vector<1x8x8xf32>
    "tpu.trace_stop"() : () -> ()
    %30 = vector.extract_strided_slice %9 {offsets = [0, 0, 8], sizes = [1, 8, 8], strides = [1, 1, 1]} : vector<1x8x32xf32> to vector<1x8x8xf32>
    %31 = vector.extract_strided_slice %11 {offsets = [0, 0, 8], sizes = [1, 8, 8], strides = [1, 1, 1]} : vector<1x8x32xf32> to vector<1x8x8xf32>
    %32 = vector.extract_strided_slice %13 {offsets = [0, 0, 8], sizes = [1, 8, 8], strides = [1, 1, 1]} : vector<1x8x32xf32> to vector<1x8x8xf32>
    "tpu.trace_start"() <{level = 10 : i32, message = "bqd,bkd->bqk"}> : () -> ()
    %cst_15 = arith.constant dense<0.000000e+00> : vector<1x8x8xf32>
    %33 = tpu.matmul %30, %31, %cst_15 {dimension_numbers = #tpu.dot_dimension_numbers<[2], [2], [1], [1], [0, 0, 0, 1, 1, 1], [0], [0]>} : vector<1x8x8xf32>, vector<1x8x8xf32>, vector<1x8x8xf32> -> vector<1x8x8xf32>
    "tpu.trace_stop"() : () -> ()
    %cst_16 = arith.constant dense<0xFF800000> : vector<1x8xf32>
    %34 = vector.multi_reduction <maximumf>, %33, %cst_16 [2] : vector<1x8x8xf32> to vector<1x8xf32>
    %35 = vector.shape_cast %34 : vector<1x8xf32> to vector<1x8x1xf32>
    %36 = vector.broadcast %35 : vector<1x8x1xf32> to vector<1x8x8xf32>
    %37 = arith.subf %33, %36 : vector<1x8x8xf32>
    %38 = math.exp %37 : vector<1x8x8xf32>
    %cst_17 = arith.constant dense<0.000000e+00> : vector<1x8xf32>
    %39 = vector.multi_reduction <add>, %38, %cst_17 [2] : vector<1x8x8xf32> to vector<1x8xf32>
    %40 = vector.shape_cast %39 : vector<1x8xf32> to vector<1x8x1xf32>
    %41 = vector.broadcast %40 : vector<1x8x1xf32> to vector<1x8x8xf32>
    %42 = arith.divf %38, %41 : vector<1x8x8xf32>
    %43 = arith.addf %28, %42 : vector<1x8x8xf32>
    "tpu.trace_start"() <{level = 10 : i32, message = "bqk,bkd->bqd"}> : () -> ()
    %cst_18 = arith.constant dense<0.000000e+00> : vector<1x8x8xf32>
    %44 = tpu.matmul %42, %32, %cst_18 {dimension_numbers = #tpu.dot_dimension_numbers<[2], [1], [1], [2], [0, 0, 0, 1, 1, 2], [0], [0]>} : vector<1x8x8xf32>, vector<1x8x8xf32>, vector<1x8x8xf32> -> vector<1x8x8xf32>
    "tpu.trace_stop"() : () -> ()
    %45 = vector.extract_strided_slice %9 {offsets = [0, 0, 16], sizes = [1, 8, 8], strides = [1, 1, 1]} : vector<1x8x32xf32> to vector<1x8x8xf32>
    %46 = vector.extract_strided_slice %11 {offsets = [0, 0, 16], sizes = [1, 8, 8], strides = [1, 1, 1]} : vector<1x8x32xf32> to vector<1x8x8xf32>
    %47 = vector.extract_strided_slice %13 {offsets = [0, 0, 16], sizes = [1, 8, 8], strides = [1, 1, 1]} : vector<1x8x32xf32> to vector<1x8x8xf32>
    "tpu.trace_start"() <{level = 10 : i32, message = "bqd,bkd->bqk"}> : () -> ()
    %cst_19 = arith.constant dense<0.000000e+00> : vector<1x8x8xf32>
    %48 = tpu.matmul %45, %46, %cst_19 {dimension_numbers = #tpu.dot_dimension_numbers<[2], [2], [1], [1], [0, 0, 0, 1, 1, 1], [0], [0]>} : vector<1x8x8xf32>, vector<1x8x8xf32>, vector<1x8x8xf32> -> vector<1x8x8xf32>
    "tpu.trace_stop"() : () -> ()
    %cst_20 = arith.constant dense<0xFF800000> : vector<1x8xf32>
    %49 = vector.multi_reduction <maximumf>, %48, %cst_20 [2] : vector<1x8x8xf32> to vector<1x8xf32>
    %50 = vector.shape_cast %49 : vector<1x8xf32> to vector<1x8x1xf32>
    %51 = vector.broadcast %50 : vector<1x8x1xf32> to vector<1x8x8xf32>
    %52 = arith.subf %48, %51 : vector<1x8x8xf32>
    %53 = math.exp %52 : vector<1x8x8xf32>
    %cst_21 = arith.constant dense<0.000000e+00> : vector<1x8xf32>
    %54 = vector.multi_reduction <add>, %53, %cst_21 [2] : vector<1x8x8xf32> to vector<1x8xf32>
    %55 = vector.shape_cast %54 : vector<1x8xf32> to vector<1x8x1xf32>
    %56 = vector.broadcast %55 : vector<1x8x1xf32> to vector<1x8x8xf32>
    %57 = arith.divf %53, %56 : vector<1x8x8xf32>
    %58 = arith.addf %43, %57 : vector<1x8x8xf32>
    "tpu.trace_start"() <{level = 10 : i32, message = "bqk,bkd->bqd"}> : () -> ()
    %cst_22 = arith.constant dense<0.000000e+00> : vector<1x8x8xf32>
    %59 = tpu.matmul %57, %47, %cst_22 {dimension_numbers = #tpu.dot_dimension_numbers<[2], [1], [1], [2], [0, 0, 0, 1, 1, 2], [0], [0]>} : vector<1x8x8xf32>, vector<1x8x8xf32>, vector<1x8x8xf32> -> vector<1x8x8xf32>
    "tpu.trace_stop"() : () -> ()
    %60 = vector.extract_strided_slice %9 {offsets = [0, 0, 24], sizes = [1, 8, 8], strides = [1, 1, 1]} : vector<1x8x32xf32> to vector<1x8x8xf32>
    %61 = vector.extract_strided_slice %11 {offsets = [0, 0, 24], sizes = [1, 8, 8], strides = [1, 1, 1]} : vector<1x8x32xf32> to vector<1x8x8xf32>
    %62 = vector.extract_strided_slice %13 {offsets = [0, 0, 24], sizes = [1, 8, 8], strides = [1, 1, 1]} : vector<1x8x32xf32> to vector<1x8x8xf32>
    "tpu.trace_start"() <{level = 10 : i32, message = "bqd,bkd->bqk"}> : () -> ()
    %cst_23 = arith.constant dense<0.000000e+00> : vector<1x8x8xf32>
    %63 = tpu.matmul %60, %61, %cst_23 {dimension_numbers = #tpu.dot_dimension_numbers<[2], [2], [1], [1], [0, 0, 0, 1, 1, 1], [0], [0]>} : vector<1x8x8xf32>, vector<1x8x8xf32>, vector<1x8x8xf32> -> vector<1x8x8xf32>
    "tpu.trace_stop"() : () -> ()
    %cst_24 = arith.constant dense<0xFF800000> : vector<1x8xf32>
    %64 = vector.multi_reduction <maximumf>, %63, %cst_24 [2] : vector<1x8x8xf32> to vector<1x8xf32>
    %65 = vector.shape_cast %64 : vector<1x8xf32> to vector<1x8x1xf32>
    %66 = vector.broadcast %65 : vector<1x8x1xf32> to vector<1x8x8xf32>
    %67 = arith.subf %63, %66 : vector<1x8x8xf32>
    %68 = math.exp %67 : vector<1x8x8xf32>
    %cst_25 = arith.constant dense<0.000000e+00> : vector<1x8xf32>
    %69 = vector.multi_reduction <add>, %68, %cst_25 [2] : vector<1x8x8xf32> to vector<1x8xf32>
    %70 = vector.shape_cast %69 : vector<1x8xf32> to vector<1x8x1xf32>
    %71 = vector.broadcast %70 : vector<1x8x1xf32> to vector<1x8x8xf32>
    %72 = arith.divf %68, %71 : vector<1x8x8xf32>
    %73 = arith.addf %58, %72 : vector<1x8x8xf32>
    "tpu.trace_start"() <{level = 10 : i32, message = "bqk,bkd->bqd"}> : () -> ()
    %cst_26 = arith.constant dense<0.000000e+00> : vector<1x8x8xf32>
    %74 = tpu.matmul %72, %62, %cst_26 {dimension_numbers = #tpu.dot_dimension_numbers<[2], [1], [1], [2], [0, 0, 0, 1, 1, 2], [0], [0]>} : vector<1x8x8xf32>, vector<1x8x8xf32>, vector<1x8x8xf32> -> vector<1x8x8xf32>
    "tpu.trace_stop"() : () -> ()
    %75 = tpu.concatenate %29, %44, %59, %74 in 2 : vector<1x8x8xf32>, vector<1x8x8xf32>, vector<1x8x8xf32>, vector<1x8x8xf32> -> vector<1x8x32xf32>
    %76 = vector.shape_cast %75 : vector<1x8x32xf32> to vector<8x32xf32>
    %c0_27 = arith.constant 0 : index
    %c0_28 = arith.constant 0 : index
    %77 = vector.load %arg8[%c0_27, %c0_28] : memref<32x32xf32, #tpu.memory_space<vmem>>, vector<32x32xf32>
    %cst_29 = arith.constant dense<0.000000e+00> : vector<8x32xf32>
    %78 = tpu.matmul %76, %77, %cst_29 {dimension_numbers = #tpu.dot_dimension_numbers<[1], [0], [0], [1], [0, 0, 1, 1], [], []>} : vector<8x32xf32>, vector<32x32xf32>, vector<8x32xf32> -> vector<8x32xf32>
    %cst_30 = arith.constant dense<0.000000e+00> : vector<8xf32>
    %79 = vector.multi_reduction <add>, %78, %cst_30 [1] : vector<8x32xf32> to vector<8xf32>
    %80 = vector.shape_cast %79 : vector<8xf32> to vector<8x1xf32>
    %cst_31 = arith.constant 3.200000e+01 : f32
    %81 = vector.broadcast %cst_31 : f32 to vector<8x1xf32>
    %82 = arith.divf %80, %81 : vector<8x1xf32>
    %83 = vector.broadcast %82 : vector<8x1xf32> to vector<8x32xf32>
    %84 = arith.subf %78, %83 : vector<8x32xf32>
    %85 = arith.mulf %84, %84 : vector<8x32xf32>
    %cst_32 = arith.constant dense<0.000000e+00> : vector<8xf32>
    %86 = vector.multi_reduction <add>, %85, %cst_32 [1] : vector<8x32xf32> to vector<8xf32>
    %87 = vector.shape_cast %86 : vector<8xf32> to vector<8x1xf32>
    %cst_33 = arith.constant 3.200000e+01 : f32
    %88 = vector.broadcast %cst_33 : f32 to vector<8x1xf32>
    %89 = arith.divf %87, %88 : vector<8x1xf32>
    %90 = vector.broadcast %82 : vector<8x1xf32> to vector<8x32xf32>
    %91 = arith.subf %78, %90 : vector<8x32xf32>
    %cst_34 = arith.constant 9.99999997E-7 : f32
    %92 = vector.broadcast %cst_34 : f32 to vector<8x1xf32>
    %93 = arith.addf %89, %92 : vector<8x1xf32>
    %94 = math.rsqrt %93 : vector<8x1xf32>
    %95 = vector.broadcast %94 : vector<8x1xf32> to vector<8x32xf32>
    %96 = arith.mulf %91, %95 : vector<8x32xf32>
    %c0_35 = arith.constant 0 : index
    %c0_36 = arith.constant 0 : index
    %97 = vector.load %arg9[%c0_35, %c0_36] : memref<1x32xf32, #tpu.memory_space<vmem>>, vector<1x32xf32>
    %98 = vector.broadcast %97 : vector<1x32xf32> to vector<8x32xf32>
    %99 = arith.mulf %96, %98 : vector<8x32xf32>
    %c0_37 = arith.constant 0 : index
    %c0_38 = arith.constant 0 : index
    %100 = vector.load %arg10[%c0_37, %c0_38] : memref<1x32xf32, #tpu.memory_space<vmem>>, vector<1x32xf32>
    %101 = vector.broadcast %100 : vector<1x32xf32> to vector<8x32xf32>
    %102 = arith.addf %99, %101 : vector<8x32xf32>
    %103 = vector.shape_cast %102 : vector<8x32xf32> to vector<1x8x32xf32>
    %c0_39 = arith.constant 0 : index
    %c0_40 = arith.constant 0 : index
    %c0_41 = arith.constant 0 : index
    %104 = vector.load %arg11[%c0_39, %c0_40, %c0_41] : memref<1x8x32xf32, #tpu.memory_space<vmem>>, vector<1x8x32xf32>
    tpu.vector_store %arg11[%c0_39, %c0_40, %c0_41], %103 {strides = array<i32>} : memref<1x8x32xf32, #tpu.memory_space<vmem>>, vector<1x8x32xf32>,
    %cst_42 = arith.constant 2.500000e-01 : f32
    %105 = vector.broadcast %cst_42 : f32 to vector<1x8x8xf32>
    %106 = arith.mulf %73, %105 : vector<1x8x8xf32>
    %c0_43 = arith.constant 0 : index
    %c0_44 = arith.constant 0 : index
    %c0_45 = arith.constant 0 : index
    %107 = vector.load %arg12[%c0_43, %c0_44, %c0_45] : memref<1x8x8xf32, #tpu.memory_space<vmem>>, vector<1x8x8xf32>
    tpu.vector_store %arg12[%c0_43, %c0_44, %c0_45], %106 {strides = array<i32>} : memref<1x8x8xf32, #tpu.memory_space<vmem>>, vector<1x8x8xf32>,
    return
  }
  func.func @transform_0(%arg0: i32, %arg1: i32) -> (i32, i32, i32) {
    %c0_i32 = arith.constant 0 : i32
    %c0_i32_0 = arith.constant 0 : i32
    return %arg0, %arg1, %c0_i32 : i32, i32, i32
  }
  func.func @transform_1(%arg0: i32, %arg1: i32) -> (i32, i32, i32) {
    %c0_i32 = arith.constant 0 : i32
    %c0_i32_0 = arith.constant 0 : i32
    %c0_i32_1 = arith.constant 0 : i32
    return %arg0, %c0_i32, %c0_i32_0 : i32, i32, i32
  }
  func.func @transform_2(%arg0: i32, %arg1: i32) -> (i32, i32, i32) {
    %c0_i32 = arith.constant 0 : i32
    %c0_i32_0 = arith.constant 0 : i32
    %c0_i32_1 = arith.constant 0 : i32
    return %arg0, %c0_i32, %c0_i32_0 : i32, i32, i32
  }
  func.func @transform_3(%arg0: i32, %arg1: i32) -> (i32, i32) {
    %c0_i32 = arith.constant 0 : i32
    %c0_i32_0 = arith.constant 0 : i32
    %c0_i32_1 = arith.constant 0 : i32
    return %c0_i32, %c0_i32_0 : i32, i32
  }
  func.func @transform_4(%arg0: i32, %arg1: i32) -> (i32, i32) {
    %c0_i32 = arith.constant 0 : i32
    %c0_i32_0 = arith.constant 0 : i32
    %c0_i32_1 = arith.constant 0 : i32
    return %c0_i32, %c0_i32_0 : i32, i32
  }
  func.func @transform_5(%arg0: i32, %arg1: i32) -> (i32, i32) {
    %c0_i32 = arith.constant 0 : i32
    %c0_i32_0 = arith.constant 0 : i32
    %c0_i32_1 = arith.constant 0 : i32
    return %c0_i32, %c0_i32_0 : i32, i32
  }
  func.func @transform_6(%arg0: i32, %arg1: i32) -> (i32, i32) {
    %c0_i32 = arith.constant 0 : i32
    %c0_i32_0 = arith.constant 0 : i32
    %c0_i32_1 = arith.constant 0 : i32
    return %c0_i32, %c0_i32_0 : i32, i32
  }
  func.func @transform_7(%arg0: i32, %arg1: i32) -> (i32, i32) {
    %c0_i32 = arith.constant 0 : i32
    %c0_i32_0 = arith.constant 0 : i32
    %c0_i32_1 = arith.constant 0 : i32
    return %c0_i32, %c0_i32_0 : i32, i32
  }
  func.func @transform_8(%arg0: i32, %arg1: i32) -> (i32, i32) {
    %c0_i32 = arith.constant 0 : i32
    %c0_i32_0 = arith.constant 0 : i32
    %c0_i32_1 = arith.constant 0 : i32
    return %c0_i32, %c0_i32_0 : i32, i32
  }
  func.func @transform_9(%arg0: i32, %arg1: i32) -> (i32, i32, i32) {
    %c0_i32 = arith.constant 0 : i32
    %c0_i32_0 = arith.constant 0 : i32
    return %arg0, %arg1, %c0_i32 : i32, i32, i32
  }
  func.func @transform_10(%arg0: i32, %arg1: i32) -> (i32, i32, i32) {
    %c0_i32 = arith.constant 0 : i32
    %c0_i32_0 = arith.constant 0 : i32
    return %arg0, %arg1, %c0_i32 : i32, i32, i32
  }
}

</mosaic_0001>

<llo_original>
// kernel: tpu_custom_call.1
$region0: #{tpu_custom_call.1}
  #allocation0 [shape = 'u32[]', space=smem, size = 0x4, offset = 0x4, fixed_abs, tag = 'smem constant byte address 0x4 - core index']
  #allocation1 [shape = 'u32[144,128]{1,0:T(1,128)}', space=vmem, size = 0x12000, scoped, tag = 'internal scratch']
  #allocation2 [shape = 'f32[8,32]{1,0:T(8,128)}', space=vmem, size = 0x1000, scoped, tag = 'scratch operand']
  #allocation3 [shape = 'f32[8,32]{1,0:T(8,128)}', space=vmem, size = 0x1000, scoped, tag = 'scratch operand']
  %s0 = inlined_call_operand.hbm [shape: f32[2,8,32], index: 0, kind: input, shape index: {}]
  %s1 = inlined_call_operand.hbm [shape: f32[2,8,32], index: 1, kind: input, shape index: {}]
  %s2 = inlined_call_operand.hbm [shape: f32[2,8,32], index: 2, kind: input, shape index: {}]
  %s3 = inlined_call_operand.hbm [shape: f32[32,32], index: 3, kind: input, shape index: {}]
  %s4 = inlined_call_operand.hbm [shape: f32[32,32], index: 4, kind: input, shape index: {}]
  %s5 = inlined_call_operand.hbm [shape: f32[32,32], index: 5, kind: input, shape index: {}]
  %s6 = inlined_call_operand.hbm [shape: f32[32,32], index: 6, kind: input, shape index: {}]
  %s7 = inlined_call_operand.vmem [shape: f32[1,32], index: 7, kind: input, shape index: {}]
  %s8 = inlined_call_operand.vmem [shape: f32[1,32], index: 8, kind: input, shape index: {}]
  %s9 = inlined_call_operand.hbm [shape: f32[2,8,32], index: 9, kind: output, shape index: {0}]
  %s10 = inlined_call_operand.hbm [shape: f32[2,8,8], index: 10, kind: output, shape index: {1}]
  %11 = xla_tuple %s9, %s10
  %s12 = sld [smem:[#allocation0]]
  $region109: #{tpu_custom_call.1} parent=0
    _
  %s14 = ssub.s32 1, %s12
  %s15 = scalar_select 0, %s14, %s12
  $region1: #{tpu_custom_call.1} parent=0
    #allocation4 [shape = 'u8[8192]{0}', space=vmem, size = 0x2000, scoped, tag = 'input window, operand 0']
    #allocation5 [shape = 's32[2]{0}', space=sflag, size = 0x8, scoped, tag = 'scoped memory for tpu_custom_call.1']
    #allocation6 [shape = 's32[2]{0}', space=sflag, size = 0x8, scoped, tag = 'scoped memory for tpu_custom_call.1']
    #allocation7 [shape = 'u8[8192]{0}', space=vmem, size = 0x2000, scoped, tag = 'input window, operand 1']
    #allocation8 [shape = 's32[2]{0}', space=sflag, size = 0x8, scoped, tag = 'scoped memory for tpu_custom_call.1']
    #allocation9 [shape = 'u8[8192]{0}', space=vmem, size = 0x2000, scoped, tag = 'input window, operand 2']
    #allocation10 [shape = 'u8[16384]{0}', space=vmem, size = 0x4000, scoped, tag = 'input window, operand 3, single buffered']
    #allocation11 [shape = 's32[1]{0}', space=sflag, size = 0x4, scoped, tag = 'scoped memory for tpu_custom_call.1']
    #allocation12 [shape = 'u8[16384]{0}', space=vmem, size = 0x4000, scoped, tag = 'input window, operand 4, single buffered']
    #allocation13 [shape = 'u8[16384]{0}', space=vmem, size = 0x4000, scoped, tag = 'input window, operand 5, single buffered']
    #allocation14 [shape = 's32[1]{0}', space=sflag, size = 0x4, scoped, tag = 'scoped memory for tpu_custom_call.1']
    #allocation15 [shape = 'u8[16384]{0}', space=vmem, size = 0x4000, scoped, tag = 'input window, operand 6, single buffered']
    #allocation16 [shape = 'u8[8192]{0}', space=vmem, size = 0x2000, scoped, tag = 'output window, operand 0']
    #allocation17 [shape = 'u8[8192]{0}', space=vmem, size = 0x2000, scoped, tag = 'output window, operand 1']
    #allocation18 [shape = 's32[2]{0}', space=sflag, size = 0x8, scoped, tag = 'scoped memory for tpu_custom_call.1']
    %16 = vsyncpa [#allocation5], 0
    %s17 = scalar_lea.sflag [#allocation5], 1
    %18 = vsyncpa %s17, 0
    %19 = vsyncpa [#allocation8], 0
    %s20 = scalar_lea.sflag [#allocation8], 1
    %21 = vsyncpa %s20, 0
    %22 = vsyncpa [#allocation11], 0
    %23 = vsyncpa [#allocation14], 0
    %24 = vsyncpa [#allocation6], 0
    %s25 = scalar_lea.sflag [#allocation6], 1
    %26 = vsyncpa %s25, 0
    %27 = vsyncpa [#allocation18], 0
    %s28 = scalar_lea.sflag [#allocation18], 1
    %29 = vsyncpa %s28, 0
    loop: start=0, step=1, limit=4
    $region2: #{tpu_custom_call.1} parent=1 // loop_pre_header
      _
    $region3: #{tpu_custom_call.1} parent=1 // loop_header
      %s31 = sphi 0, %s35
      %p32 = scmp.ge.s32.totalorder %s31, 4
      %s38 = sphi 0, %s50
      %s39 = sphi 0, %s46
      %s40 = sphi 0, %s38
      %s41 = sphi 0, %s39
      %s42 = sphi 0, %s40
      %s43 = sphi 0, %s41
      %s55 = sphi 0, %s57
      %s58 = sphi 0, %s55
      %s59 = sphi 0, %s58
      %s75 = sphi 0, %s59
      %s81 = sphi 0, %s83
      %s84 = sphi 0, %s81
      %s85 = sphi 0, %s84
      %s101 = sphi 0, %s85
      %s107 = sphi 0, %s109
      %s110 = sphi 0, %s107
      %s111 = sphi 0, %s110
      %s127 = sphi 0, %s111
      %s131 = sphi 0, %s131
      %s133 = sphi 0, %s131
      %s134 = sphi 0, %s133
      %s148 = sphi 0, %s134
      %s152 = sphi 0, %s152
      %s154 = sphi 0, %s152
      %s155 = sphi 0, %s154
      %s169 = sphi 0, %s155
      %s173 = sphi 0, %s173
      %s175 = sphi 0, %s173
      %s176 = sphi 0, %s175
      %s190 = sphi 0, %s176
      %s194 = sphi 0, %s194
      %s196 = sphi 0, %s194
      %s197 = sphi 0, %s196
      %s211 = sphi 0, %s197
      %s215 = sphi 0, %s215
      %s217 = sphi 0, %s215
      %s218 = sphi 0, %s217
      %s232 = sphi 0, %s218
      %s236 = sphi 0, %s236
      %s238 = sphi 0, %s236
      %s239 = sphi 0, %s238
      %s253 = sphi 0, %s239
      %s261 = sphi 0, %s263
      %s264 = sphi 0, %s261
      %s265 = sphi 0, %s264
      %s281 = sphi 0, %s265
      %s289 = sphi 0, %s291
      %s292 = sphi 0, %s289
      %s293 = sphi 0, %s292
      %s309 = sphi 0, %s293
    $region4: #{tpu_custom_call.1} parent=1 // loop_header_branch
      %34 = sbr.rel (%p32) target = $region8
    $region5: #{tpu_custom_call.1} parent=1 // loop_body
      %s36 = ssub.s32 %s31, 1
      %s37 = ssub.s32 %s31, 2
      %s44 = sadd.s32 1, %s39
      %p45 = scmp.ge.s32.totalorder %s44, 1
      %s46 = scalar_select %p45, 0, %s44
      %s47 = sadd.s32 1, %s38
      %s48 = scalar_select %p45, %s47, %s38
      %p49 = scmp.ge.s32.totalorder %s48, 2
      %s50 = scalar_select %p49, 0, %s48
      %s51 = ssub.s32 %s38, %s50
      %s52 = ssub.s32 %s39, %s46
      %s53 = sor.u32 %s51, %s52
      %p54 = scmp.eq.s32.totalorder %s53, 0
      %s56 = sadd.s32 %s55, 1
      %s57 = scalar_select %p54, %s55, %s56
      %p60 = pneg %p54
      %p61 = scmp.eq.s32.totalorder %s31, 1
      %p62 = por %p60, %p61
      %p63 = scmp.ne.s32.totalorder %s55, %s58
      %p64 = scmp.eq.s32.totalorder %s31, 0
      %p65 = por %p63, %p64
      %p66 = scmp.ne.s32.totalorder %s55, %s58
      %p67 = scmp.eq.s32.totalorder %s36, 1
      %p68 = por %p66, %p67
      %p69 = scmp.ne.s32.totalorder %s58, %s59
      %p70 = scmp.eq.s32.totalorder %s36, 0
      %p71 = por %p69, %p70
      %p72 = scmp.ne.s32.totalorder %s58, %s59
      %p73 = scmp.eq.s32.totalorder %s37, 1
      %p74 = por %p72, %p73
      %p76 = scmp.ne.s32.totalorder %s59, %s75
      %p77 = scmp.eq.s32.totalorder %s37, 0
      %p78 = por %p76, %p77
      %s79 = ssub.s32 %s38, %s50
      %p80 = scmp.eq.s32.totalorder %s79, 0
      %s82 = sadd.s32 %s81, 1
      %s83 = scalar_select %p80, %s81, %s82
      %p86 = pneg %p80
      %p87 = scmp.eq.s32.totalorder %s31, 1
      %p88 = por %p86, %p87
      %p89 = scmp.ne.s32.totalorder %s81, %s84
      %p90 = scmp.eq.s32.totalorder %s31, 0
      %p91 = por %p89, %p90
      %p92 = scmp.ne.s32.totalorder %s81, %s84
      %p93 = scmp.eq.s32.totalorder %s36, 1
      %p94 = por %p92, %p93
      %p95 = scmp.ne.s32.totalorder %s84, %s85
      %p96 = scmp.eq.s32.totalorder %s36, 0
      %p97 = por %p95, %p96
      %p98 = scmp.ne.s32.totalorder %s84, %s85
      %p99 = scmp.eq.s32.totalorder %s37, 1
      %p100 = por %p98, %p99
      %p102 = scmp.ne.s32.totalorder %s85, %s101
      %p103 = scmp.eq.s32.totalorder %s37, 0
      %p104 = por %p102, %p103
      %s105 = ssub.s32 %s38, %s50
      %p106 = scmp.eq.s32.totalorder %s105, 0
      %s108 = sadd.s32 %s107, 1
      %s109 = scalar_select %p106, %s107, %s108
      %p112 = pneg %p106
      %p113 = scmp.eq.s32.totalorder %s31, 1
      %p114 = por %p112, %p113
      %p115 = scmp.ne.s32.totalorder %s107, %s110
      %p116 = scmp.eq.s32.totalorder %s31, 0
      %p117 = por %p115, %p116
      %p118 = scmp.ne.s32.totalorder %s107, %s110
      %p119 = scmp.eq.s32.totalorder %s36, 1
      %p120 = por %p118, %p119
      %p121 = scmp.ne.s32.totalorder %s110, %s111
      %p122 = scmp.eq.s32.totalorder %s36, 0
      %p123 = por %p121, %p122
      %p124 = scmp.ne.s32.totalorder %s110, %s111
      %p125 = scmp.eq.s32.totalorder %s37, 1
      %p126 = por %p124, %p125
      %p128 = scmp.ne.s32.totalorder %s111, %s127
      %p129 = scmp.eq.s32.totalorder %s37, 0
      %p130 = por %p128, %p129
      %s132 = sadd.s32 %s131, 1
      %p135 = scmp.eq.s32.totalorder %s31, 1
      %p136 = scmp.ne.s32.totalorder %s131, %s133
      %p137 = scmp.eq.s32.totalorder %s31, 0
      %p138 = por %p136, %p137
      %p139 = scmp.ne.s32.totalorder %s131, %s133
      %p140 = scmp.eq.s32.totalorder %s36, 1
      %p141 = por %p139, %p140
      %p142 = scmp.ne.s32.totalorder %s133, %s134
      %p143 = scmp.eq.s32.totalorder %s36, 0
      %p144 = por %p142, %p143
      %p145 = scmp.ne.s32.totalorder %s133, %s134
      %p146 = scmp.eq.s32.totalorder %s37, 1
      %p147 = por %p145, %p146
      %p149 = scmp.ne.s32.totalorder %s134, %s148
      %p150 = scmp.eq.s32.totalorder %s37, 0
      %p151 = por %p149, %p150
      %s153 = sadd.s32 %s152, 1
      %p156 = scmp.eq.s32.totalorder %s31, 1
      %p157 = scmp.ne.s32.totalorder %s152, %s154
      %p158 = scmp.eq.s32.totalorder %s31, 0
      %p159 = por %p157, %p158
      %p160 = scmp.ne.s32.totalorder %s152, %s154
      %p161 = scmp.eq.s32.totalorder %s36, 1
      %p162 = por %p160, %p161
      %p163 = scmp.ne.s32.totalorder %s154, %s155
      %p164 = scmp.eq.s32.totalorder %s36, 0
      %p165 = por %p163, %p164
      %p166 = scmp.ne.s32.totalorder %s154, %s155
      %p167 = scmp.eq.s32.totalorder %s37, 1
      %p168 = por %p166, %p167
      %p170 = scmp.ne.s32.totalorder %s155, %s169
      %p171 = scmp.eq.s32.totalorder %s37, 0
      %p172 = por %p170, %p171
      %s174 = sadd.s32 %s173, 1
      %p177 = scmp.eq.s32.totalorder %s31, 1
      %p178 = scmp.ne.s32.totalorder %s173, %s175
      %p179 = scmp.eq.s32.totalorder %s31, 0
      %p180 = por %p178, %p179
      %p181 = scmp.ne.s32.totalorder %s173, %s175
      %p182 = scmp.eq.s32.totalorder %s36, 1
      %p183 = por %p181, %p182
      %p184 = scmp.ne.s32.totalorder %s175, %s176
      %p185 = scmp.eq.s32.totalorder %s36, 0
      %p186 = por %p184, %p185
      %p187 = scmp.ne.s32.totalorder %s175, %s176
      %p188 = scmp.eq.s32.totalorder %s37, 1
      %p189 = por %p187, %p188
      %p191 = scmp.ne.s32.totalorder %s176, %s190
      %p192 = scmp.eq.s32.totalorder %s37, 0
      %p193 = por %p191, %p192
      %s195 = sadd.s32 %s194, 1
      %p198 = scmp.eq.s32.totalorder %s31, 1
      %p199 = scmp.ne.s32.totalorder %s194, %s196
      %p200 = scmp.eq.s32.totalorder %s31, 0
      %p201 = por %p199, %p200
      %p202 = scmp.ne.s32.totalorder %s194, %s196
      %p203 = scmp.eq.s32.totalorder %s36, 1
      %p204 = por %p202, %p203
      %p205 = scmp.ne.s32.totalorder %s196, %s197
      %p206 = scmp.eq.s32.totalorder %s36, 0
      %p207 = por %p205, %p206
      %p208 = scmp.ne.s32.totalorder %s196, %s197
      %p209 = scmp.eq.s32.totalorder %s37, 1
      %p210 = por %p208, %p209
      %p212 = scmp.ne.s32.totalorder %s197, %s211
      %p213 = scmp.eq.s32.totalorder %s37, 0
      %p214 = por %p212, %p213
      %s216 = sadd.s32 %s215, 1
      %p219 = scmp.eq.s32.totalorder %s31, 1
      %p220 = scmp.ne.s32.totalorder %s215, %s217
      %p221 = scmp.eq.s32.totalorder %s31, 0
      %p222 = por %p220, %p221
      %p223 = scmp.ne.s32.totalorder %s215, %s217
      %p224 = scmp.eq.s32.totalorder %s36, 1
      %p225 = por %p223, %p224
      %p226 = scmp.ne.s32.totalorder %s217, %s218
      %p227 = scmp.eq.s32.totalorder %s36, 0
      %p228 = por %p226, %p227
      %p229 = scmp.ne.s32.totalorder %s217, %s218
      %p230 = scmp.eq.s32.totalorder %s37, 1
      %p231 = por %p229, %p230
      %p233 = scmp.ne.s32.totalorder %s218, %s232
      %p234 = scmp.eq.s32.totalorder %s37, 0
      %p235 = por %p233, %p234
      %s237 = sadd.s32 %s236, 1
      %p240 = scmp.eq.s32.totalorder %s31, 1
      %p241 = scmp.ne.s32.totalorder %s236, %s238
      %p242 = scmp.eq.s32.totalorder %s31, 0
      %p243 = por %p241, %p242
      %p244 = scmp.ne.s32.totalorder %s236, %s238
      %p245 = scmp.eq.s32.totalorder %s36, 1
      %p246 = por %p244, %p245
      %p247 = scmp.ne.s32.totalorder %s238, %s239
      %p248 = scmp.eq.s32.totalorder %s36, 0
      %p249 = por %p247, %p248
      %p250 = scmp.ne.s32.totalorder %s238, %s239
      %p251 = scmp.eq.s32.totalorder %s37, 1
      %p252 = por %p250, %p251
      %p254 = scmp.ne.s32.totalorder %s239, %s253
      %p255 = scmp.eq.s32.totalorder %s37, 0
      %p256 = por %p254, %p255
      %s257 = ssub.s32 %s38, %s50
      %s258 = ssub.s32 %s39, %s46
      %s259 = sor.u32 %s257, %s258
      %p260 = scmp.eq.s32.totalorder %s259, 0
      %s262 = sadd.s32 %s261, 1
      %s263 = scalar_select %p260, %s261, %s262
      %p266 = pneg %p260
      %p267 = scmp.eq.s32.totalorder %s31, 1
      %p268 = por %p266, %p267
      %p269 = scmp.ne.s32.totalorder %s261, %s264
      %p270 = scmp.eq.s32.totalorder %s31, 0
      %p271 = por %p269, %p270
      %p272 = scmp.ne.s32.totalorder %s261, %s264
      %p273 = scmp.eq.s32.totalorder %s36, 1
      %p274 = por %p272, %p273
      %p275 = scmp.ne.s32.totalorder %s264, %s265
      %p276 = scmp.eq.s32.totalorder %s36, 0
      %p277 = por %p275, %p276
      %p278 = scmp.ne.s32.totalorder %s264, %s265
      %p279 = scmp.eq.s32.totalorder %s37, 1
      %p280 = por %p278, %p279
      %p282 = scmp.ne.s32.totalorder %s265, %s281
      %p283 = scmp.eq.s32.totalorder %s37, 0
      %p284 = por %p282, %p283
      %s285 = ssub.s32 %s38, %s50
      %s286 = ssub.s32 %s39, %s46
      %s287 = sor.u32 %s285, %s286
      %p288 = scmp.eq.s32.totalorder %s287, 0
      %s290 = sadd.s32 %s289, 1
      %s291 = scalar_select %p288, %s289, %s290
      %p294 = pneg %p288
      %p295 = scmp.eq.s32.totalorder %s31, 1
      %p296 = por %p294, %p295
      %p297 = scmp.ne.s32.totalorder %s289, %s292
      %p298 = scmp.eq.s32.totalorder %s31, 0
      %p299 = por %p297, %p298
      %p300 = scmp.ne.s32.totalorder %s289, %s292
      %p301 = scmp.eq.s32.totalorder %s36, 1
      %p302 = por %p300, %p301
      %p303 = scmp.ne.s32.totalorder %s292, %s293
      %p304 = scmp.eq.s32.totalorder %s36, 0
      %p305 = por %p303, %p304
      %p306 = scmp.ne.s32.totalorder %s292, %s293
      %p307 = scmp.eq.s32.totalorder %s37, 1
      %p308 = por %p306, %p307
      %p310 = scmp.ne.s32.totalorder %s293, %s309
      %p311 = scmp.eq.s32.totalorder %s37, 0
      %p312 = por %p310, %p311
      %p313 = scmp.le.s32.totalorder 1, %s31
      %p314 = scmp.lt.s32.totalorder %s31, 3
      %p315 = pnand %p313, %p314
      %p316 = pneg %p315
      // Predicated region
      $region9: #{tpu_custom_call.1} parent=5 // pred_check
        _
      $region10: #{tpu_custom_call.1} parent=5 // pred_check_branch
        %318 = sbr.rel (%p315) target = $region12
      $region11: #{tpu_custom_call.1} parent=5 // pred_region
        %s319 = ssub.s32 %s31, 1
        // Predicated region
        $region13: #{tpu_custom_call.1} parent=11 // pred_check
          %p320 = pneg %p144
        $region14: #{tpu_custom_call.1} parent=11 // pred_check_branch
          %322 = sbr.rel (%p320) target = $region16
        $region15: #{tpu_custom_call.1} parent=11 // pred_region
          %s324 = ssub.s32 512, 512
          %325 = vsyncadd [#allocation11], %s324
          %s326 = sshll.u32 [#allocation10], 4
          %s327 = int_to_ptr.vmem [resolvable:$true] %s326
          %332 = dma.hbm_to_vmem [thread:$0]  %s3, 512, %s327, [#allocation11], 128, 128, 8
        $region16: #{tpu_custom_call.1} parent=11 // pred_fallthru
          _
        // Predicated region
        $region17: #{tpu_custom_call.1} parent=11 // pred_check
          %p333 = pneg %p165
        $region18: #{tpu_custom_call.1} parent=11 // pred_check_branch
          %335 = sbr.rel (%p333) target = $region20
        $region19: #{tpu_custom_call.1} parent=11 // pred_region
          %s337 = ssub.s32 512, 512
          %338 = vsyncadd [#allocation11], %s337
          %s339 = sshll.u32 [#allocation12], 4
          %s340 = int_to_ptr.vmem [resolvable:$true] %s339
          %345 = dma.hbm_to_vmem [thread:$0]  %s4, 512, %s340, [#allocation11], 128, 128, 8
        $region20: #{tpu_custom_call.1} parent=11 // pred_fallthru
          _
        // Predicated region
        $region21: #{tpu_custom_call.1} parent=11 // pred_check
          %p346 = pneg %p186
        $region22: #{tpu_custom_call.1} parent=11 // pred_check_branch
          %348 = sbr.rel (%p346) target = $region24
        $region23: #{tpu_custom_call.1} parent=11 // pred_region
          %s350 = ssub.s32 512, 512
          %351 = vsyncadd [#allocation14], %s350
          %s352 = sshll.u32 [#allocation13], 4
          %s353 = int_to_ptr.vmem [resolvable:$true] %s352
          %358 = dma.hbm_to_vmem [thread:$0]  %s5, 512, %s353, [#allocation14], 128, 128, 8
        $region24: #{tpu_custom_call.1} parent=11 // pred_fallthru
          _
        // Predicated region
        $region25: #{tpu_custom_call.1} parent=11 // pred_check
          %p359 = pneg %p207
        $region26: #{tpu_custom_call.1} parent=11 // pred_check_branch
          %361 = sbr.rel (%p359) target = $region28
        $region27: #{tpu_custom_call.1} parent=11 // pred_region
          %s363 = ssub.s32 512, 512
          %364 = vsyncadd [#allocation14], %s363
          %s365 = sshll.u32 [#allocation15], 4
          %s366 = int_to_ptr.vmem [resolvable:$true] %s365
          %371 = dma.hbm_to_vmem [thread:$0]  %s6, 512, %s366, [#allocation14], 128, 128, 8
        $region28: #{tpu_custom_call.1} parent=11 // pred_fallthru
          _
        // Predicated region
        $region29: #{tpu_custom_call.1} parent=11 // pred_check
          %p372 = pneg %p228
        $region30: #{tpu_custom_call.1} parent=11 // pred_check_branch
          %374 = sbr.rel (%p372) target = $region32
        $region31: #{tpu_custom_call.1} parent=11 // pred_region
          _
        $region32: #{tpu_custom_call.1} parent=11 // pred_fallthru
          _
        // Predicated region
        $region33: #{tpu_custom_call.1} parent=11 // pred_check
          %p375 = pneg %p249
        $region34: #{tpu_custom_call.1} parent=11 // pred_check_branch
          %377 = sbr.rel (%p375) target = $region36
        $region35: #{tpu_custom_call.1} parent=11 // pred_region
          _
        $region36: #{tpu_custom_call.1} parent=11 // pred_fallthru
          _
      $region12: #{tpu_custom_call.1} parent=5 // pred_fallthru
        _
      %p378 = scmp.lt.s32.totalorder %s31, 2
      // Predicated region
      $region37: #{tpu_custom_call.1} parent=5 // pred_check
        %p379 = pneg %p378
      $region38: #{tpu_custom_call.1} parent=5 // pred_check_branch
        %381 = sbr.rel (%p379) target = $region40
      $region39: #{tpu_custom_call.1} parent=5 // pred_region
        // Predicated region
        $region41: #{tpu_custom_call.1} parent=39 // pred_check
          %p382 = pneg %p65
        $region42: #{tpu_custom_call.1} parent=39 // pred_check_branch
          %384 = sbr.rel (%p382) target = $region44
        $region43: #{tpu_custom_call.1} parent=39 // pred_region
          %s385 = sand.u32 %s55, 1
          %s386 = scalar_lea.sflag [#allocation5], %s385
          %s387 = sand.u32 %s55, 1
          %s388 = smul.addr %s387, 8
          %s389 = scalar_lea.vmem [#allocation4], %s388
          %s391 = ssub.s32 128, 128
          %392 = vsyncadd %s386, %s391
          %s393 = sadd.s32 %s39, %s38
          %s394 = smul.addr %s393, 128
          %s395 = scalar_lea.hbm %s0, %s394
          %s397 = sshll.u32 %s389, 4
          %s398 = int_to_ptr.vmem [resolvable:$true] %s397
          %400 = dma.hbm_to_vmem [thread:$0]  %s395, 128, %s398, %s386
        $region44: #{tpu_custom_call.1} parent=39 // pred_fallthru
          _
        // Predicated region
        $region45: #{tpu_custom_call.1} parent=39 // pred_check
          %p401 = pneg %p91
        $region46: #{tpu_custom_call.1} parent=39 // pred_check_branch
          %403 = sbr.rel (%p401) target = $region48
        $region47: #{tpu_custom_call.1} parent=39 // pred_region
          %s404 = sand.u32 %s31, 1
          %s405 = scalar_lea.sflag [#allocation8], %s404
          %s406 = sand.u32 %s81, 1
          %s407 = smul.addr %s406, 8
          %s408 = scalar_lea.vmem [#allocation7], %s407
          %s410 = ssub.s32 128, 128
          %411 = vsyncadd %s405, %s410
          %s412 = smul.addr %s38, 128
          %s413 = scalar_lea.hbm %s1, %s412
          %s415 = sshll.u32 %s408, 4
          %s416 = int_to_ptr.vmem [resolvable:$true] %s415
          %418 = dma.hbm_to_vmem [thread:$0]  %s413, 128, %s416, %s405
        $region48: #{tpu_custom_call.1} parent=39 // pred_fallthru
          _
        // Predicated region
        $region49: #{tpu_custom_call.1} parent=39 // pred_check
          %p419 = pneg %p117
        $region50: #{tpu_custom_call.1} parent=39 // pred_check_branch
          %421 = sbr.rel (%p419) target = $region52
        $region51: #{tpu_custom_call.1} parent=39 // pred_region
          %s422 = sand.u32 %s31, 1
          %s423 = scalar_lea.sflag [#allocation8], %s422
          %s424 = sand.u32 %s107, 1
          %s425 = smul.addr %s424, 8
          %s426 = scalar_lea.vmem [#allocation9], %s425
          %s428 = ssub.s32 128, 128
          %429 = vsyncadd %s423, %s428
          %s430 = smul.addr %s38, 128
          %s431 = scalar_lea.hbm %s2, %s430
          %s433 = sshll.u32 %s426, 4
          %s434 = int_to_ptr.vmem [resolvable:$true] %s433
          %436 = dma.hbm_to_vmem [thread:$0]  %s431, 128, %s434, %s423
        $region52: #{tpu_custom_call.1} parent=39 // pred_fallthru
          _
      $region40: #{tpu_custom_call.1} parent=5 // pred_fallthru
        _
      %p437 = scmp.le.s32.totalorder 1, %s31
      %p438 = scmp.lt.s32.totalorder %s31, 3
      %p439 = pnand %p437, %p438
      %p440 = pneg %p439
      // Predicated region
      $region53: #{tpu_custom_call.1} parent=5 // pred_check
        _
      $region54: #{tpu_custom_call.1} parent=5 // pred_check_branch
        %442 = sbr.rel (%p439) target = $region56
      $region55: #{tpu_custom_call.1} parent=5 // pred_region
        %s443 = ssub.s32 %s31, 1
        %s444 = sand.u32 %s58, 1
        %s445 = scalar_lea.sflag [#allocation5], %s444
        %s446 = sand.u32 %s58, 1
        %s447 = smul.addr %s446, 8
        %s448 = scalar_lea.vmem [#allocation4], %s447
        // Predicated region
        $region57: #{tpu_custom_call.1} parent=55 // pred_check
          %p449 = pneg %p71
        $region58: #{tpu_custom_call.1} parent=55 // pred_check_branch
          %451 = sbr.rel (%p449) target = $region60
        $region59: #{tpu_custom_call.1} parent=55 // pred_region
          %452 = dma.done %s445, 128
        $region60: #{tpu_custom_call.1} parent=55 // pred_fallthru
          _
        %s453 = sand.u32 %s36, 1
        %s454 = scalar_lea.sflag [#allocation8], %s453
        %s455 = sand.u32 %s84, 1
        %s456 = smul.addr %s455, 8
        %s457 = scalar_lea.vmem [#allocation7], %s456
        // Predicated region
        $region61: #{tpu_custom_call.1} parent=55 // pred_check
          %p458 = pneg %p97
        $region62: #{tpu_custom_call.1} parent=55 // pred_check_branch
          %460 = sbr.rel (%p458) target = $region64
        $region63: #{tpu_custom_call.1} parent=55 // pred_region
          %461 = dma.done %s454, 128
        $region64: #{tpu_custom_call.1} parent=55 // pred_fallthru
          _
        %s462 = sand.u32 %s36, 1
        %s463 = scalar_lea.sflag [#allocation8], %s462
        %s464 = sand.u32 %s110, 1
        %s465 = smul.addr %s464, 8
        %s466 = scalar_lea.vmem [#allocation9], %s465
        // Predicated region
        $region65: #{tpu_custom_call.1} parent=55 // pred_check
          %p467 = pneg %p123
        $region66: #{tpu_custom_call.1} parent=55 // pred_check_branch
          %469 = sbr.rel (%p467) target = $region68
        $region67: #{tpu_custom_call.1} parent=55 // pred_region
          %470 = dma.done %s463, 128
        $region68: #{tpu_custom_call.1} parent=55 // pred_fallthru
          _
        // Predicated region
        $region69: #{tpu_custom_call.1} parent=55 // pred_check
          %p471 = pneg %p144
        $region70: #{tpu_custom_call.1} parent=55 // pred_check_branch
          %473 = sbr.rel (%p471) target = $region72
        $region71: #{tpu_custom_call.1} parent=55 // pred_region
          %474 = dma.done [#allocation11], 512
        $region72: #{tpu_custom_call.1} parent=55 // pred_fallthru
          _
        // Predicated region
        $region73: #{tpu_custom_call.1} parent=55 // pred_check
          %p475 = pneg %p165
        $region74: #{tpu_custom_call.1} parent=55 // pred_check_branch
          %477 = sbr.rel (%p475) target = $region76
        $region75: #{tpu_custom_call.1} parent=55 // pred_region
          %478 = dma.done [#allocation11], 512
        $region76: #{tpu_custom_call.1} parent=55 // pred_fallthru
          _
        // Predicated region
        $region77: #{tpu_custom_call.1} parent=55 // pred_check
          %p479 = pneg %p186
        $region78: #{tpu_custom_call.1} parent=55 // pred_check_branch
          %481 = sbr.rel (%p479) target = $region80
        $region79: #{tpu_custom_call.1} parent=55 // pred_region
          %482 = dma.done [#allocation14], 512
        $region80: #{tpu_custom_call.1} parent=55 // pred_fallthru
          _
        // Predicated region
        $region81: #{tpu_custom_call.1} parent=55 // pred_check
          %p483 = pneg %p207
        $region82: #{tpu_custom_call.1} parent=55 // pred_check_branch
          %485 = sbr.rel (%p483) target = $region84
        $region83: #{tpu_custom_call.1} parent=55 // pred_region
          %486 = dma.done [#allocation14], 512
        $region84: #{tpu_custom_call.1} parent=55 // pred_fallthru
          _
        %s487 = sand.u32 %s58, 1
        %s488 = scalar_lea.sflag [#allocation5], %s487
        %s489 = sand.u32 %s58, 1
        %s490 = smul.addr %s489, 8
        %s491 = scalar_lea.vmem [#allocation4], %s490
        %p492 = pneg %p71
        %p493 = pneg %p68
        %s494 = sand.u32 %s36, 1
        %s495 = scalar_lea.sflag [#allocation8], %s494
        %s496 = sand.u32 %s84, 1
        %s497 = smul.addr %s496, 8
        %s498 = scalar_lea.vmem [#allocation7], %s497
        %p499 = pneg %p97
        %p500 = pneg %p94
        %s501 = sand.u32 %s36, 1
        %s502 = scalar_lea.sflag [#allocation8], %s501
        %s503 = sand.u32 %s110, 1
        %s504 = smul.addr %s503, 8
        %s505 = scalar_lea.vmem [#allocation9], %s504
        %p506 = pneg %p123
        %p507 = pneg %p120
        %p508 = pneg %p144
        %p509 = pneg %p141
        %p510 = pneg %p165
        %p511 = pneg %p162
        %p512 = pneg %p186
        %p513 = pneg %p183
        %p514 = pneg %p207
        %p515 = pneg %p204
        %p516 = pneg %p228
        %p517 = pneg %p225
        %p518 = pneg %p249
        %p519 = pneg %p246
        %p520 = pneg %p277
        %p521 = pneg %p274
        %s522 = sand.u32 %s264, 1
        %s523 = scalar_lea.sflag [#allocation6], %s522
        %s524 = sand.u32 %s264, 1
        %s525 = smul.addr %s524, 8
        %s526 = scalar_lea.vmem [#allocation16], %s525
        %p527 = pneg %p305
        %p528 = pneg %p302
        %s529 = sand.u32 %s292, 1
        %s530 = scalar_lea.sflag [#allocation18], %s529
        %s531 = sand.u32 %s292, 1
        %s532 = smul.addr %s531, 8
        %s533 = scalar_lea.vmem [#allocation17], %s532
        %p534 = scmp.eq.s32.totalorder %s41, 0
        // Predicated region
        $region85: #{tpu_custom_call.1} parent=55 // pred_check
          %p535 = pneg %p534
        $region86: #{tpu_custom_call.1} parent=55 // pred_check_branch
          %537 = sbr.rel (%p535) target = $region88
        $region87: #{tpu_custom_call.1} parent=55 // pred_region
          %v538 = vld [vmem:[%s457] sm:$0xff]
          %v539 = vld [vmem:[%s466] sm:$0xff]
          %v540 = vld [vmem:[#allocation12] sm:$0xff]
          %v541 = vld [vmem:[#allocation12 + $0x8] sm:$0xff]
          %v542 = vld [vmem:[#allocation12 + $0x10] sm:$0xff]
          %v543 = vld [vmem:[#allocation12 + $0x18] sm:$0xff]
          %vm544 = vcmask 261120
          %v546 = vsel %vm544, %v538, 0
          %548 = vmatprep.subr.mxu0 0.0
          %549 = vmatpush1.msra.mxu0 %v540
          %550 = vmatprep.subr.mxu0 0.0
          %551 = vmatpush1.msra.mxu0 %v541
          %552 = vmatprep.subr.mxu0 0.0
          %553 = vmatpush1.msra.mxu0 %v542
          %554 = vmatprep.subr.mxu0 0.0
          %555 = vmatpush1.msra.mxu0 %v543
          %556 = vmatprep.subr.mxu0 0.0
          %557 = vmatpush1.msra.mxu0 0.0
          %558 = vmatprep.subr.mxu0 0.0
          %559 = vmatpush1.msra.mxu0 0.0
          %560 = vmatprep.subr.mxu0 0.0
          %561 = vmatpush1.msra.mxu0 0.0
          %562 = vmatprep.subr.mxu0 0.0
          %563 = vmatpush1.msra.mxu0 0.0
          %564 = vmatprep.subr.mxu0 0.0
          %565 = vmatpush1.msra.mxu0 0.0
          %566 = vmatprep.subr.mxu0 0.0
          %567 = vmatpush1.msra.mxu0 0.0
          %568 = vmatprep.subr.mxu0 0.0
          %569 = vmatpush1.msra.mxu0 0.0
          %570 = vmatprep.subr.mxu0 0.0
          %571 = vmatpush1.msra.mxu0 0.0
          %572 = vmatprep.subr.mxu0 0.0
          %573 = vmatpush1.msra.mxu0 0.0
          %574 = vmatprep.subr.mxu0 0.0
          %575 = vmatpush1.msra.mxu0 0.0
          %576 = vmatprep.subr.mxu0 0.0
          %577 = vmatpush1.msra.mxu0 0.0
          %578 = vmatprep.subr.mxu0 0.0
          %579 = vmatpush1.msra.mxu0 0.0
          %580 = vmatprep.subr.mxu0 0.0
          %581 = vmatpush1.msra.mxu0 0.0
          %582 = vmatprep.subr.mxu0 0.0
          %583 = vmatpush1.msra.mxu0 0.0
          %584 = vmatprep.subr.mxu0 0.0
          %585 = vmatpush1.msra.mxu0 0.0
          %586 = vmatprep.subr.mxu0 0.0
          %587 = vmatpush1.msra.mxu0 0.0
          %588 = vmatprep.subr.mxu0 0.0
          %589 = vmatpush1.msra.mxu0 0.0
          %590 = vmatprep.subr.mxu0 0.0
          %591 = vmatpush1.msra.mxu0 0.0
          %592 = vmatprep.subr.mxu0 0.0
          %593 = vmatpush1.msra.mxu0 0.0
          %594 = vmatprep.subr.mxu0 0.0
          %595 = vmatpush1.msra.mxu0 0.0
          %596 = vmatprep.subr.mxu0 0.0
          %597 = vmatpush1.msra.mxu0 0.0
          %598 = vmatprep.subr.mxu0 0.0
          %599 = vmatpush1.msra.mxu0 0.0
          %600 = vmatprep.subr.mxu0 0.0
          %601 = vmatpush1.msra.mxu0 0.0
          %602 = vmatprep.subr.mxu0 0.0
          %603 = vmatpush1.msra.mxu0 0.0
          %604 = vmatprep.subr.mxu0 0.0
          %605 = vmatpush1.msra.mxu0 0.0
          %606 = vmatprep.subr.mxu0 0.0
          %607 = vmatpush1.msra.mxu0 0.0
          %608 = vmatprep.subr.mxu0 0.0
          %609 = vmatpush1.msra.mxu0 0.0
          %610 = vmatprep.subr.mxu0 0.0
          %611 = vmatpush1.msra.mxu0 0.0
          %612 = vmatprep.mubr.f32.mxu0 0.0
          %613 = vmatmul.mubr.f32.gmra.mrb[0].mxu0 %v546
          %v614 = vpop.f32.mrb[0].mxu0
          %v615 = vadd.f32 0.0, %v614
          %v616 = vpop.f32.mrb[0].mxu0
          %617 = vdwg.mxu0
          %618 = vst.msk [vmem:[#allocation2] sm:$0xff] %vm544, %v615
          %v619 = vld [vmem:[#allocation13] sm:$0xff]
          %v620 = vld [vmem:[#allocation13 + $0x8] sm:$0xff]
          %v621 = vld [vmem:[#allocation13 + $0x10] sm:$0xff]
          %v622 = vld [vmem:[#allocation13 + $0x18] sm:$0xff]
          %v624 = vsel %vm544, %v539, 0
          %626 = vmatprep.subr.mxu0 0.0
          %627 = vmatpush1.msra.mxu0 %v619
          %628 = vmatprep.subr.mxu0 0.0
          %629 = vmatpush1.msra.mxu0 %v620
          %630 = vmatprep.subr.mxu0 0.0
          %631 = vmatpush1.msra.mxu0 %v621
          %632 = vmatprep.subr.mxu0 0.0
          %633 = vmatpush1.msra.mxu0 %v622
          %634 = vmatprep.subr.mxu0 0.0
          %635 = vmatpush1.msra.mxu0 0.0
          %636 = vmatprep.subr.mxu0 0.0
          %637 = vmatpush1.msra.mxu0 0.0
          %638 = vmatprep.subr.mxu0 0.0
          %639 = vmatpush1.msra.mxu0 0.0
          %640 = vmatprep.subr.mxu0 0.0
          %641 = vmatpush1.msra.mxu0 0.0
          %642 = vmatprep.subr.mxu0 0.0
          %643 = vmatpush1.msra.mxu0 0.0
          %644 = vmatprep.subr.mxu0 0.0
          %645 = vmatpush1.msra.mxu0 0.0
          %646 = vmatprep.subr.mxu0 0.0
          %647 = vmatpush1.msra.mxu0 0.0
          %648 = vmatprep.subr.mxu0 0.0
          %649 = vmatpush1.msra.mxu0 0.0
          %650 = vmatprep.subr.mxu0 0.0
          %651 = vmatpush1.msra.mxu0 0.0
          %652 = vmatprep.subr.mxu0 0.0
          %653 = vmatpush1.msra.mxu0 0.0
          %654 = vmatprep.subr.mxu0 0.0
          %655 = vmatpush1.msra.mxu0 0.0
          %656 = vmatprep.subr.mxu0 0.0
          %657 = vmatpush1.msra.mxu0 0.0
          %658 = vmatprep.subr.mxu0 0.0
          %659 = vmatpush1.msra.mxu0 0.0
          %660 = vmatprep.subr.mxu0 0.0
          %661 = vmatpush1.msra.mxu0 0.0
          %662 = vmatprep.subr.mxu0 0.0
          %663 = vmatpush1.msra.mxu0 0.0
          %664 = vmatprep.subr.mxu0 0.0
          %665 = vmatpush1.msra.mxu0 0.0
          %666 = vmatprep.subr.mxu0 0.0
          %667 = vmatpush1.msra.mxu0 0.0
          %668 = vmatprep.subr.mxu0 0.0
          %669 = vmatpush1.msra.mxu0 0.0
          %670 = vmatprep.subr.mxu0 0.0
          %671 = vmatpush1.msra.mxu0 0.0
          %672 = vmatprep.subr.mxu0 0.0
          %673 = vmatpush1.msra.mxu0 0.0
          %674 = vmatprep.subr.mxu0 0.0
          %675 = vmatpush1.msra.mxu0 0.0
          %676 = vmatprep.subr.mxu0 0.0
          %677 = vmatpush1.msra.mxu0 0.0
          %678 = vmatprep.subr.mxu0 0.0
          %679 = vmatpush1.msra.mxu0 0.0
          %680 = vmatprep.subr.mxu0 0.0
          %681 = vmatpush1.msra.mxu0 0.0
          %682 = vmatprep.subr.mxu0 0.0
          %683 = vmatpush1.msra.mxu0 0.0
          %684 = vmatprep.subr.mxu0 0.0
          %685 = vmatpush1.msra.mxu0 0.0
          %686 = vmatprep.subr.mxu0 0.0
          %687 = vmatpush1.msra.mxu0 0.0
          %688 = vmatprep.subr.mxu0 0.0
          %689 = vmatpush1.msra.mxu0 0.0
          %690 = vmatprep.mubr.f32.mxu0 0.0
          %691 = vmatmul.mubr.f32.gmra.mrb[0].mxu0 %v624
          %v692 = vpop.f32.mrb[0].mxu0
          %v693 = vadd.f32 0.0, %v692
          %v694 = vpop.f32.mrb[0].mxu0
          %695 = vdwg.mxu0
          %696 = vst.msk [vmem:[#allocation3] sm:$0xff] %vm544, %v693
        $region88: #{tpu_custom_call.1} parent=55 // pred_fallthru
          _
        %v697 = vld [vmem:[%s448] sm:$0xff]
        %v698 = vld [vmem:[#allocation10] sm:$0xff]
        %v699 = vld [vmem:[#allocation10 + $0x8] sm:$0xff]
        %v700 = vld [vmem:[#allocation10 + $0x10] sm:$0xff]
        %v701 = vld [vmem:[#allocation10 + $0x18] sm:$0xff]
        %vm702 = vcmask 261120
        %v704 = vsel %vm702, %v697, 0
        %706 = vmatprep.subr.mxu0 0.0
        %707 = vmatpush1.msra.mxu0 %v698
        %708 = vmatprep.subr.mxu0 0.0
        %709 = vmatpush1.msra.mxu0 %v699
        %710 = vmatprep.subr.mxu0 0.0
        %711 = vmatpush1.msra.mxu0 %v700
        %712 = vmatprep.subr.mxu0 0.0
        %713 = vmatpush1.msra.mxu0 %v701
        %714 = vmatprep.subr.mxu0 0.0
        %715 = vmatpush1.msra.mxu0 0.0
        %716 = vmatprep.subr.mxu0 0.0
        %717 = vmatpush1.msra.mxu0 0.0
        %718 = vmatprep.subr.mxu0 0.0
        %719 = vmatpush1.msra.mxu0 0.0
        %720 = vmatprep.subr.mxu0 0.0
        %721 = vmatpush1.msra.mxu0 0.0
        %722 = vmatprep.subr.mxu0 0.0
        %723 = vmatpush1.msra.mxu0 0.0
        %724 = vmatprep.subr.mxu0 0.0
        %725 = vmatpush1.msra.mxu0 0.0
        %726 = vmatprep.subr.mxu0 0.0
        %727 = vmatpush1.msra.mxu0 0.0
        %728 = vmatprep.subr.mxu0 0.0
        %729 = vmatpush1.msra.mxu0 0.0
        %730 = vmatprep.subr.mxu0 0.0
        %731 = vmatpush1.msra.mxu0 0.0
        %732 = vmatprep.subr.mxu0 0.0
        %733 = vmatpush1.msra.mxu0 0.0
        %734 = vmatprep.subr.mxu0 0.0
        %735 = vmatpush1.msra.mxu0 0.0
        %736 = vmatprep.subr.mxu0 0.0
        %737 = vmatpush1.msra.mxu0 0.0
        %738 = vmatprep.subr.mxu0 0.0
        %739 = vmatpush1.msra.mxu0 0.0
        %740 = vmatprep.subr.mxu0 0.0
        %741 = vmatpush1.msra.mxu0 0.0
        %742 = vmatprep.subr.mxu0 0.0
        %743 = vmatpush1.msra.mxu0 0.0
        %744 = vmatprep.subr.mxu0 0.0
        %745 = vmatpush1.msra.mxu0 0.0
        %746 = vmatprep.subr.mxu0 0.0
        %747 = vmatpush1.msra.mxu0 0.0
        %748 = vmatprep.subr.mxu0 0.0
        %749 = vmatpush1.msra.mxu0 0.0
        %750 = vmatprep.subr.mxu0 0.0
        %751 = vmatpush1.msra.mxu0 0.0
        %752 = vmatprep.subr.mxu0 0.0
        %753 = vmatpush1.msra.mxu0 0.0
        %754 = vmatprep.subr.mxu0 0.0
        %755 = vmatpush1.msra.mxu0 0.0
        %756 = vmatprep.subr.mxu0 0.0
        %757 = vmatpush1.msra.mxu0 0.0
        %758 = vmatprep.subr.mxu0 0.0
        %759 = vmatpush1.msra.mxu0 0.0
        %760 = vmatprep.subr.mxu0 0.0
        %761 = vmatpush1.msra.mxu0 0.0
        %762 = vmatprep.subr.mxu0 0.0
        %763 = vmatpush1.msra.mxu0 0.0
        %764 = vmatprep.subr.mxu0 0.0
        %765 = vmatpush1.msra.mxu0 0.0
        %766 = vmatprep.subr.mxu0 0.0
        %767 = vmatpush1.msra.mxu0 0.0
        %768 = vmatprep.subr.mxu0 0.0
        %769 = vmatpush1.msra.mxu0 0.0
        %770 = vmatprep.mubr.f32.mxu0 0.0
        %771 = vmatmul.mubr.f32.gmra.mrb[0].mxu0 %v704
        %v772 = vpop.f32.mrb[0].mxu0
        %v773 = vadd.f32 0.0, %v772
        %v774 = vpop.f32.mrb[0].mxu0
        %775 = vdwg.mxu0
        %v776 = vmul.f32 %v773, 0.35355338
        %v777 = vld [vmem:[#allocation2] sm:$0xff]
        %v778 = vld [vmem:[#allocation3] sm:$0xff]
        %vm779 = vcmask 64512
        %v781 = vsel %vm779, %v776, 0
        %v784 = vsel %vm779, %v777, 0
        %786 = vmatprep.subr.mxu0 0.0
        %787 = vmatpush1.xpose.msra.mxu0 %v784
        %788 = vmatprep.subr.mxu0 0.0
        %789 = vmatpush1.xpose.msra.mxu0 0.0
        %790 = vmatprep.subr.mxu0 0.0
        %791 = vmatpush1.xpose.msra.mxu0 0.0
        %792 = vmatprep.subr.mxu0 0.0
        %793 = vmatpush1.xpose.msra.mxu0 0.0
        %794 = vmatprep.subr.mxu0 0.0
        %795 = vmatpush1.xpose.msra.mxu0 0.0
        %796 = vmatprep.subr.mxu0 0.0
        %797 = vmatpush1.xpose.msra.mxu0 0.0
        %798 = vmatprep.subr.mxu0 0.0
        %799 = vmatpush1.xpose.msra.mxu0 0.0
        %800 = vmatprep.subr.mxu0 0.0
        %801 = vmatpush1.xpose.msra.mxu0 0.0
        %802 = vmatprep.subr.mxu0 0.0
        %803 = vmatpush1.xpose.msra.mxu0 0.0
        %804 = vmatprep.subr.mxu0 0.0
        %805 = vmatpush1.xpose.msra.mxu0 0.0
        %806 = vmatprep.subr.mxu0 0.0
        %807 = vmatpush1.xpose.msra.mxu0 0.0
        %808 = vmatprep.subr.mxu0 0.0
        %809 = vmatpush1.xpose.msra.mxu0 0.0
        %810 = vmatprep.subr.mxu0 0.0
        %811 = vmatpush1.xpose.msra.mxu0 0.0
        %812 = vmatprep.subr.mxu0 0.0
        %813 = vmatpush1.xpose.msra.mxu0 0.0
        %814 = vmatprep.subr.mxu0 0.0
        %815 = vmatpush1.xpose.msra.mxu0 0.0
        %816 = vmatprep.subr.mxu0 0.0
        %817 = vmatpush1.xpose.msra.mxu0 0.0
        %818 = vmatprep.subr.mxu0 0.0
        %819 = vmatpush1.xpose.msra.mxu0 0.0
        %820 = vmatprep.subr.mxu0 0.0
        %821 = vmatpush1.xpose.msra.mxu0 0.0
        %822 = vmatprep.subr.mxu0 0.0
        %823 = vmatpush1.xpose.msra.mxu0 0.0
        %824 = vmatprep.subr.mxu0 0.0
        %825 = vmatpush1.xpose.msra.mxu0 0.0
        %826 = vmatprep.subr.mxu0 0.0
        %827 = vmatpush1.xpose.msra.mxu0 0.0
        %828 = vmatprep.subr.mxu0 0.0
        %829 = vmatpush1.xpose.msra.mxu0 0.0
        %830 = vmatprep.subr.mxu0 0.0
        %831 = vmatpush1.xpose.msra.mxu0 0.0
        %832 = vmatprep.subr.mxu0 0.0
        %833 = vmatpush1.xpose.msra.mxu0 0.0
        %834 = vmatprep.subr.mxu0 0.0
        %835 = vmatpush1.xpose.msra.mxu0 0.0
        %836 = vmatprep.subr.mxu0 0.0
        %837 = vmatpush1.xpose.msra.mxu0 0.0
        %838 = vmatprep.subr.mxu0 0.0
        %839 = vmatpush1.xpose.msra.mxu0 0.0
        %840 = vmatprep.subr.mxu0 0.0
        %841 = vmatpush1.xpose.msra.mxu0 0.0
        %842 = vmatprep.subr.mxu0 0.0
        %843 = vmatpush1.xpose.msra.mxu0 0.0
        %844 = vmatprep.subr.mxu0 0.0
        %845 = vmatpush1.xpose.msra.mxu0 0.0
        %846 = vmatprep.subr.mxu0 0.0
        %847 = vmatpush1.xpose.msra.mxu0 0.0
        %848 = vmatprep.subr.mxu0 0.0
        %849 = vmatpush1.xpose.msra.mxu0 0.0
        %850 = vmatprep.mubr.f32.mxu0 0.0
        %851 = vmatmul.mubr.f32.gmra.mrb[0].mxu0 %v781
        %v852 = vpop.f32.mrb[0].mxu0
        %v853 = vadd.f32 0.0, %v852
        %v854 = vpop.f32.mrb[0].mxu0
        %855 = vdwg.mxu0
        %v856 = vsel %vm779, %v853, -inf
        %857 = vmax.xlane.f32.xlu0 %v856
        %v858 = vpop.xlane.xlu0 %857
        %v859 = vsub.f32 %v853, %v858
        %v860 = vmul.f32 %v859, 1.442695
        %v861 = vpow.pop %v860
        %v862 = vsel %vm779, %v861, 0.0
        %863 = vadd.xlane.f32.xlu0 %v862
        %v864 = vpop.xlane.xlu0 %863
        %v865 = vrcp.pop %v864
        %v866 = vmul.f32 %v861, %v865
        %v867 = vadd.f32 %v866, 0.0
        %v869 = vsel %vm779, %v866, 0
        %871 = vmatprep.subr.mxu0 0.0
        %872 = vmatpush1.msra.mxu0 %v778
        %873 = vmatprep.subr.mxu0 0.0
        %874 = vmatpush1.msra.mxu0 0.0
        %875 = vmatprep.subr.mxu0 0.0
        %876 = vmatpush1.msra.mxu0 0.0
        %877 = vmatprep.subr.mxu0 0.0
        %878 = vmatpush1.msra.mxu0 0.0
        %879 = vmatprep.subr.mxu0 0.0
        %880 = vmatpush1.msra.mxu0 0.0
        %881 = vmatprep.subr.mxu0 0.0
        %882 = vmatpush1.msra.mxu0 0.0
        %883 = vmatprep.subr.mxu0 0.0
        %884 = vmatpush1.msra.mxu0 0.0
        %885 = vmatprep.subr.mxu0 0.0
        %886 = vmatpush1.msra.mxu0 0.0
        %887 = vmatprep.subr.mxu0 0.0
        %888 = vmatpush1.msra.mxu0 0.0
        %889 = vmatprep.subr.mxu0 0.0
        %890 = vmatpush1.msra.mxu0 0.0
        %891 = vmatprep.subr.mxu0 0.0
        %892 = vmatpush1.msra.mxu0 0.0
        %893 = vmatprep.subr.mxu0 0.0
        %894 = vmatpush1.msra.mxu0 0.0
        %895 = vmatprep.subr.mxu0 0.0
        %896 = vmatpush1.msra.mxu0 0.0
        %897 = vmatprep.subr.mxu0 0.0
        %898 = vmatpush1.msra.mxu0 0.0
        %899 = vmatprep.subr.mxu0 0.0
        %900 = vmatpush1.msra.mxu0 0.0
        %901 = vmatprep.subr.mxu0 0.0
        %902 = vmatpush1.msra.mxu0 0.0
        %903 = vmatprep.subr.mxu0 0.0
        %904 = vmatpush1.msra.mxu0 0.0
        %905 = vmatprep.subr.mxu0 0.0
        %906 = vmatpush1.msra.mxu0 0.0
        %907 = vmatprep.subr.mxu0 0.0
        %908 = vmatpush1.msra.mxu0 0.0
        %909 = vmatprep.subr.mxu0 0.0
        %910 = vmatpush1.msra.mxu0 0.0
        %911 = vmatprep.subr.mxu0 0.0
        %912 = vmatpush1.msra.mxu0 0.0
        %913 = vmatprep.subr.mxu0 0.0
        %914 = vmatpush1.msra.mxu0 0.0
        %915 = vmatprep.subr.mxu0 0.0
        %916 = vmatpush1.msra.mxu0 0.0
        %917 = vmatprep.subr.mxu0 0.0
        %918 = vmatpush1.msra.mxu0 0.0
        %919 = vmatprep.subr.mxu0 0.0
        %920 = vmatpush1.msra.mxu0 0.0
        %921 = vmatprep.subr.mxu0 0.0
        %922 = vmatpush1.msra.mxu0 0.0
        %923 = vmatprep.subr.mxu0 0.0
        %924 = vmatpush1.msra.mxu0 0.0
        %925 = vmatprep.subr.mxu0 0.0
        %926 = vmatpush1.msra.mxu0 0.0
        %927 = vmatprep.subr.mxu0 0.0
        %928 = vmatpush1.msra.mxu0 0.0
        %929 = vmatprep.subr.mxu0 0.0
        %930 = vmatpush1.msra.mxu0 0.0
        %931 = vmatprep.subr.mxu0 0.0
        %932 = vmatpush1.msra.mxu0 0.0
        %933 = vmatprep.subr.mxu0 0.0
        %934 = vmatpush1.msra.mxu0 0.0
        %935 = vmatprep.mubr.f32.mxu0 0.0
        %936 = vmatmul.mubr.f32.gmra.mrb[0].mxu0 %v869
        %v937 = vpop.f32.mrb[0].mxu0
        %v938 = vadd.f32 0.0, %v937
        %v939 = vpop.f32.mrb[0].mxu0
        %940 = vdwg.mxu0
        %941 = vrot.lane.b32.xlu0 %v776, 120
        %v942 = vpop.permute.xlu0 %941
        %943 = vrot.lane.b32.xlu0 %v777, 120
        %v944 = vpop.permute.xlu0 %943
        %v945 = vsel %vm779, %v942, 0
        %v947 = vsel %vm779, %v944, 0
        %949 = vmatprep.subr.mxu0 0.0
        %950 = vmatpush1.xpose.msra.mxu0 %v947
        %951 = vmatprep.subr.mxu0 0.0
        %952 = vmatpush1.xpose.msra.mxu0 0.0
        %953 = vmatprep.subr.mxu0 0.0
        %954 = vmatpush1.xpose.msra.mxu0 0.0
        %955 = vmatprep.subr.mxu0 0.0
        %956 = vmatpush1.xpose.msra.mxu0 0.0
        %957 = vmatprep.subr.mxu0 0.0
        %958 = vmatpush1.xpose.msra.mxu0 0.0
        %959 = vmatprep.subr.mxu0 0.0
        %960 = vmatpush1.xpose.msra.mxu0 0.0
        %961 = vmatprep.subr.mxu0 0.0
        %962 = vmatpush1.xpose.msra.mxu0 0.0
        %963 = vmatprep.subr.mxu0 0.0
        %964 = vmatpush1.xpose.msra.mxu0 0.0
        %965 = vmatprep.subr.mxu0 0.0
        %966 = vmatpush1.xpose.msra.mxu0 0.0
        %967 = vmatprep.subr.mxu0 0.0
        %968 = vmatpush1.xpose.msra.mxu0 0.0
        %969 = vmatprep.subr.mxu0 0.0
        %970 = vmatpush1.xpose.msra.mxu0 0.0
        %971 = vmatprep.subr.mxu0 0.0
        %972 = vmatpush1.xpose.msra.mxu0 0.0
        %973 = vmatprep.subr.mxu0 0.0
        %974 = vmatpush1.xpose.msra.mxu0 0.0
        %975 = vmatprep.subr.mxu0 0.0
        %976 = vmatpush1.xpose.msra.mxu0 0.0
        %977 = vmatprep.subr.mxu0 0.0
        %978 = vmatpush1.xpose.msra.mxu0 0.0
        %979 = vmatprep.subr.mxu0 0.0
        %980 = vmatpush1.xpose.msra.mxu0 0.0
        %981 = vmatprep.subr.mxu0 0.0
        %982 = vmatpush1.xpose.msra.mxu0 0.0
        %983 = vmatprep.subr.mxu0 0.0
        %984 = vmatpush1.xpose.msra.mxu0 0.0
        %985 = vmatprep.subr.mxu0 0.0
        %986 = vmatpush1.xpose.msra.mxu0 0.0
        %987 = vmatprep.subr.mxu0 0.0
        %988 = vmatpush1.xpose.msra.mxu0 0.0
        %989 = vmatprep.subr.mxu0 0.0
        %990 = vmatpush1.xpose.msra.mxu0 0.0
        %991 = vmatprep.subr.mxu0 0.0
        %992 = vmatpush1.xpose.msra.mxu0 0.0
        %993 = vmatprep.subr.mxu0 0.0
        %994 = vmatpush1.xpose.msra.mxu0 0.0
        %995 = vmatprep.subr.mxu0 0.0
        %996 = vmatpush1.xpose.msra.mxu0 0.0
        %997 = vmatprep.subr.mxu0 0.0
        %998 = vmatpush1.xpose.msra.mxu0 0.0
        %999 = vmatprep.subr.mxu0 0.0
        %1000 = vmatpush1.xpose.msra.mxu0 0.0
        %1001 = vmatprep.subr.mxu0 0.0
        %1002 = vmatpush1.xpose.msra.mxu0 0.0
        %1003 = vmatprep.subr.mxu0 0.0
        %1004 = vmatpush1.xpose.msra.mxu0 0.0
        %1005 = vmatprep.subr.mxu0 0.0
        %1006 = vmatpush1.xpose.msra.mxu0 0.0
        %1007 = vmatprep.subr.mxu0 0.0
        %1008 = vmatpush1.xpose.msra.mxu0 0.0
        %1009 = vmatprep.subr.mxu0 0.0
        %1010 = vmatpush1.xpose.msra.mxu0 0.0
        %1011 = vmatprep.subr.mxu0 0.0
        %1012 = vmatpush1.xpose.msra.mxu0 0.0
        %1013 = vmatprep.mubr.f32.mxu0 0.0
        %1014 = vmatmul.mubr.f32.gmra.mrb[0].mxu0 %v945
        %v1015 = vpop.f32.mrb[0].mxu0
        %v1016 = vadd.f32 0.0, %v1015
        %v1017 = vpop.f32.mrb[0].mxu0
        %1018 = vdwg.mxu0
        %v1019 = vsel %vm779, %v1016, -inf
        %1020 = vmax.xlane.f32.xlu0 %v1019
        %v1021 = vpop.xlane.xlu0 %1020
        %v1022 = vsub.f32 %v1016, %v1021
        %v1023 = vmul.f32 %v1022, 1.442695
        %v1024 = vpow.pop %v1023
        %v1025 = vsel %vm779, %v1024, 0.0
        %1026 = vadd.xlane.f32.xlu0 %v1025
        %v1027 = vpop.xlane.xlu0 %1026
        %v1028 = vrcp.pop %v1027
        %v1029 = vmul.f32 %v1024, %v1028
        %v1030 = vadd.f32 %v867, %v1029
        %1032 = vrot.lane.b32.xlu0 %v778, 120
        %v1033 = vpop.permute.xlu0 %1032
        %v1036 = vsel %vm779, %v1029, 0
        %1038 = vmatprep.subr.mxu0 0.0
        %1039 = vmatpush1.msra.mxu0 %v1033
        %1040 = vmatprep.subr.mxu0 0.0
        %1041 = vmatpush1.msra.mxu0 0.0
        %1042 = vmatprep.subr.mxu0 0.0
        %1043 = vmatpush1.msra.mxu0 0.0
        %1044 = vmatprep.subr.mxu0 0.0
        %1045 = vmatpush1.msra.mxu0 0.0
        %1046 = vmatprep.subr.mxu0 0.0
        %1047 = vmatpush1.msra.mxu0 0.0
        %1048 = vmatprep.subr.mxu0 0.0
        %1049 = vmatpush1.msra.mxu0 0.0
        %1050 = vmatprep.subr.mxu0 0.0
        %1051 = vmatpush1.msra.mxu0 0.0
        %1052 = vmatprep.subr.mxu0 0.0
        %1053 = vmatpush1.msra.mxu0 0.0
        %1054 = vmatprep.subr.mxu0 0.0
        %1055 = vmatpush1.msra.mxu0 0.0
        %1056 = vmatprep.subr.mxu0 0.0
        %1057 = vmatpush1.msra.mxu0 0.0
        %1058 = vmatprep.subr.mxu0 0.0
        %1059 = vmatpush1.msra.mxu0 0.0
        %1060 = vmatprep.subr.mxu0 0.0
        %1061 = vmatpush1.msra.mxu0 0.0
        %1062 = vmatprep.subr.mxu0 0.0
        %1063 = vmatpush1.msra.mxu0 0.0
        %1064 = vmatprep.subr.mxu0 0.0
        %1065 = vmatpush1.msra.mxu0 0.0
        %1066 = vmatprep.subr.mxu0 0.0
        %1067 = vmatpush1.msra.mxu0 0.0
        %1068 = vmatprep.subr.mxu0 0.0
        %1069 = vmatpush1.msra.mxu0 0.0
        %1070 = vmatprep.subr.mxu0 0.0
        %1071 = vmatpush1.msra.mxu0 0.0
        %1072 = vmatprep.subr.mxu0 0.0
        %1073 = vmatpush1.msra.mxu0 0.0
        %1074 = vmatprep.subr.mxu0 0.0
        %1075 = vmatpush1.msra.mxu0 0.0
        %1076 = vmatprep.subr.mxu0 0.0
        %1077 = vmatpush1.msra.mxu0 0.0
        %1078 = vmatprep.subr.mxu0 0.0
        %1079 = vmatpush1.msra.mxu0 0.0
        %1080 = vmatprep.subr.mxu0 0.0
        %1081 = vmatpush1.msra.mxu0 0.0
        %1082 = vmatprep.subr.mxu0 0.0
        %1083 = vmatpush1.msra.mxu0 0.0
        %1084 = vmatprep.subr.mxu0 0.0
        %1085 = vmatpush1.msra.mxu0 0.0
        %1086 = vmatprep.subr.mxu0 0.0
        %1087 = vmatpush1.msra.mxu0 0.0
        %1088 = vmatprep.subr.mxu0 0.0
        %1089 = vmatpush1.msra.mxu0 0.0
        %1090 = vmatprep.subr.mxu0 0.0
        %1091 = vmatpush1.msra.mxu0 0.0
        %1092 = vmatprep.subr.mxu0 0.0
        %1093 = vmatpush1.msra.mxu0 0.0
        %1094 = vmatprep.subr.mxu0 0.0
        %1095 = vmatpush1.msra.mxu0 0.0
        %1096 = vmatprep.subr.mxu0 0.0
        %1097 = vmatpush1.msra.mxu0 0.0
        %1098 = vmatprep.subr.mxu0 0.0
        %1099 = vmatpush1.msra.mxu0 0.0
        %1100 = vmatprep.subr.mxu0 0.0
        %1101 = vmatpush1.msra.mxu0 0.0
        %1102 = vmatprep.mubr.f32.mxu0 0.0
        %1103 = vmatmul.mubr.f32.gmra.mrb[0].mxu0 %v1036
        %v1104 = vpop.f32.mrb[0].mxu0
        %v1105 = vadd.f32 0.0, %v1104
        %v1106 = vpop.f32.mrb[0].mxu0
        %1107 = vdwg.mxu0
        %1108 = vrot.lane.b32.xlu0 %v776, 112
        %v1109 = vpop.permute.xlu0 %1108
        %1110 = vrot.lane.b32.xlu0 %v777, 112
        %v1111 = vpop.permute.xlu0 %1110
        %v1112 = vsel %vm779, %v1109, 0
        %v1114 = vsel %vm779, %v1111, 0
        %1116 = vmatprep.subr.mxu0 0.0
        %1117 = vmatpush1.xpose.msra.mxu0 %v1114
        %1118 = vmatprep.subr.mxu0 0.0
        %1119 = vmatpush1.xpose.msra.mxu0 0.0
        %1120 = vmatprep.subr.mxu0 0.0
        %1121 = vmatpush1.xpose.msra.mxu0 0.0
        %1122 = vmatprep.subr.mxu0 0.0
        %1123 = vmatpush1.xpose.msra.mxu0 0.0
        %1124 = vmatprep.subr.mxu0 0.0
        %1125 = vmatpush1.xpose.msra.mxu0 0.0
        %1126 = vmatprep.subr.mxu0 0.0
        %1127 = vmatpush1.xpose.msra.mxu0 0.0
        %1128 = vmatprep.subr.mxu0 0.0
        %1129 = vmatpush1.xpose.msra.mxu0 0.0
        %1130 = vmatprep.subr.mxu0 0.0
        %1131 = vmatpush1.xpose.msra.mxu0 0.0
        %1132 = vmatprep.subr.mxu0 0.0
        %1133 = vmatpush1.xpose.msra.mxu0 0.0
        %1134 = vmatprep.subr.mxu0 0.0
        %1135 = vmatpush1.xpose.msra.mxu0 0.0
        %1136 = vmatprep.subr.mxu0 0.0
        %1137 = vmatpush1.xpose.msra.mxu0 0.0
        %1138 = vmatprep.subr.mxu0 0.0
        %1139 = vmatpush1.xpose.msra.mxu0 0.0
        %1140 = vmatprep.subr.mxu0 0.0
        %1141 = vmatpush1.xpose.msra.mxu0 0.0
        %1142 = vmatprep.subr.mxu0 0.0
        %1143 = vmatpush1.xpose.msra.mxu0 0.0
        %1144 = vmatprep.subr.mxu0 0.0
        %1145 = vmatpush1.xpose.msra.mxu0 0.0
        %1146 = vmatprep.subr.mxu0 0.0
        %1147 = vmatpush1.xpose.msra.mxu0 0.0
        %1148 = vmatprep.subr.mxu0 0.0
        %1149 = vmatpush1.xpose.msra.mxu0 0.0
        %1150 = vmatprep.subr.mxu0 0.0
        %1151 = vmatpush1.xpose.msra.mxu0 0.0
        %1152 = vmatprep.subr.mxu0 0.0
        %1153 = vmatpush1.xpose.msra.mxu0 0.0
        %1154 = vmatprep.subr.mxu0 0.0
        %1155 = vmatpush1.xpose.msra.mxu0 0.0
        %1156 = vmatprep.subr.mxu0 0.0
        %1157 = vmatpush1.xpose.msra.mxu0 0.0
        %1158 = vmatprep.subr.mxu0 0.0
        %1159 = vmatpush1.xpose.msra.mxu0 0.0
        %1160 = vmatprep.subr.mxu0 0.0
        %1161 = vmatpush1.xpose.msra.mxu0 0.0
        %1162 = vmatprep.subr.mxu0 0.0
        %1163 = vmatpush1.xpose.msra.mxu0 0.0
        %1164 = vmatprep.subr.mxu0 0.0
        %1165 = vmatpush1.xpose.msra.mxu0 0.0
        %1166 = vmatprep.subr.mxu0 0.0
        %1167 = vmatpush1.xpose.msra.mxu0 0.0
        %1168 = vmatprep.subr.mxu0 0.0
        %1169 = vmatpush1.xpose.msra.mxu0 0.0
        %1170 = vmatprep.subr.mxu0 0.0
        %1171 = vmatpush1.xpose.msra.mxu0 0.0
        %1172 = vmatprep.subr.mxu0 0.0
        %1173 = vmatpush1.xpose.msra.mxu0 0.0
        %1174 = vmatprep.subr.mxu0 0.0
        %1175 = vmatpush1.xpose.msra.mxu0 0.0
        %1176 = vmatprep.subr.mxu0 0.0
        %1177 = vmatpush1.xpose.msra.mxu0 0.0
        %1178 = vmatprep.subr.mxu0 0.0
        %1179 = vmatpush1.xpose.msra.mxu0 0.0
        %1180 = vmatprep.mubr.f32.mxu0 0.0
        %1181 = vmatmul.mubr.f32.gmra.mrb[0].mxu0 %v1112
        %v1182 = vpop.f32.mrb[0].mxu0
        %v1183 = vadd.f32 0.0, %v1182
        %v1184 = vpop.f32.mrb[0].mxu0
        %1185 = vdwg.mxu0
        %v1186 = vsel %vm779, %v1183, -inf
        %1187 = vmax.xlane.f32.xlu0 %v1186
        %v1188 = vpop.xlane.xlu0 %1187
        %v1189 = vsub.f32 %v1183, %v1188
        %v1190 = vmul.f32 %v1189, 1.442695
        %v1191 = vpow.pop %v1190
        %v1192 = vsel %vm779, %v1191, 0.0
        %1193 = vadd.xlane.f32.xlu0 %v1192
        %v1194 = vpop.xlane.xlu0 %1193
        %v1195 = vrcp.pop %v1194
        %v1196 = vmul.f32 %v1191, %v1195
        %v1197 = vadd.f32 %v1030, %v1196
        %1198 = vrot.lane.b32.xlu0 %v778, 112
        %v1199 = vpop.permute.xlu0 %1198
        %v1202 = vsel %vm779, %v1196, 0
        %1204 = vmatprep.subr.mxu0 0.0
        %1205 = vmatpush1.msra.mxu0 %v1199
        %1206 = vmatprep.subr.mxu0 0.0
        %1207 = vmatpush1.msra.mxu0 0.0
        %1208 = vmatprep.subr.mxu0 0.0
        %1209 = vmatpush1.msra.mxu0 0.0
        %1210 = vmatprep.subr.mxu0 0.0
        %1211 = vmatpush1.msra.mxu0 0.0
        %1212 = vmatprep.subr.mxu0 0.0
        %1213 = vmatpush1.msra.mxu0 0.0
        %1214 = vmatprep.subr.mxu0 0.0
        %1215 = vmatpush1.msra.mxu0 0.0
        %1216 = vmatprep.subr.mxu0 0.0
        %1217 = vmatpush1.msra.mxu0 0.0
        %1218 = vmatprep.subr.mxu0 0.0
        %1219 = vmatpush1.msra.mxu0 0.0
        %1220 = vmatprep.subr.mxu0 0.0
        %1221 = vmatpush1.msra.mxu0 0.0
        %1222 = vmatprep.subr.mxu0 0.0
        %1223 = vmatpush1.msra.mxu0 0.0
        %1224 = vmatprep.subr.mxu0 0.0
        %1225 = vmatpush1.msra.mxu0 0.0
        %1226 = vmatprep.subr.mxu0 0.0
        %1227 = vmatpush1.msra.mxu0 0.0
        %1228 = vmatprep.subr.mxu0 0.0
        %1229 = vmatpush1.msra.mxu0 0.0
        %1230 = vmatprep.subr.mxu0 0.0
        %1231 = vmatpush1.msra.mxu0 0.0
        %1232 = vmatprep.subr.mxu0 0.0
        %1233 = vmatpush1.msra.mxu0 0.0
        %1234 = vmatprep.subr.mxu0 0.0
        %1235 = vmatpush1.msra.mxu0 0.0
        %1236 = vmatprep.subr.mxu0 0.0
        %1237 = vmatpush1.msra.mxu0 0.0
        %1238 = vmatprep.subr.mxu0 0.0
        %1239 = vmatpush1.msra.mxu0 0.0
        %1240 = vmatprep.subr.mxu0 0.0
        %1241 = vmatpush1.msra.mxu0 0.0
        %1242 = vmatprep.subr.mxu0 0.0
        %1243 = vmatpush1.msra.mxu0 0.0
        %1244 = vmatprep.subr.mxu0 0.0
        %1245 = vmatpush1.msra.mxu0 0.0
        %1246 = vmatprep.subr.mxu0 0.0
        %1247 = vmatpush1.msra.mxu0 0.0
        %1248 = vmatprep.subr.mxu0 0.0
        %1249 = vmatpush1.msra.mxu0 0.0
        %1250 = vmatprep.subr.mxu0 0.0
        %1251 = vmatpush1.msra.mxu0 0.0
        %1252 = vmatprep.subr.mxu0 0.0
        %1253 = vmatpush1.msra.mxu0 0.0
        %1254 = vmatprep.subr.mxu0 0.0
        %1255 = vmatpush1.msra.mxu0 0.0
        %1256 = vmatprep.subr.mxu0 0.0
        %1257 = vmatpush1.msra.mxu0 0.0
        %1258 = vmatprep.subr.mxu0 0.0
        %1259 = vmatpush1.msra.mxu0 0.0
        %1260 = vmatprep.subr.mxu0 0.0
        %1261 = vmatpush1.msra.mxu0 0.0
        %1262 = vmatprep.subr.mxu0 0.0
        %1263 = vmatpush1.msra.mxu0 0.0
        %1264 = vmatprep.subr.mxu0 0.0
        %1265 = vmatpush1.msra.mxu0 0.0
        %1266 = vmatprep.subr.mxu0 0.0
        %1267 = vmatpush1.msra.mxu0 0.0
        %1268 = vmatprep.mubr.f32.mxu0 0.0
        %1269 = vmatmul.mubr.f32.gmra.mrb[0].mxu0 %v1202
        %v1270 = vpop.f32.mrb[0].mxu0
        %v1271 = vadd.f32 0.0, %v1270
        %v1272 = vpop.f32.mrb[0].mxu0
        %1273 = vdwg.mxu0
        %1274 = vrot.lane.b32.xlu0 %v776, 104
        %v1275 = vpop.permute.xlu0 %1274
        %1276 = vrot.lane.b32.xlu0 %v777, 104
        %v1277 = vpop.permute.xlu0 %1276
        %v1278 = vsel %vm779, %v1275, 0
        %v1280 = vsel %vm779, %v1277, 0
        %1282 = vmatprep.subr.mxu0 0.0
        %1283 = vmatpush1.xpose.msra.mxu0 %v1280
        %1284 = vmatprep.subr.mxu0 0.0
        %1285 = vmatpush1.xpose.msra.mxu0 0.0
        %1286 = vmatprep.subr.mxu0 0.0
        %1287 = vmatpush1.xpose.msra.mxu0 0.0
        %1288 = vmatprep.subr.mxu0 0.0
        %1289 = vmatpush1.xpose.msra.mxu0 0.0
        %1290 = vmatprep.subr.mxu0 0.0
        %1291 = vmatpush1.xpose.msra.mxu0 0.0
        %1292 = vmatprep.subr.mxu0 0.0
        %1293 = vmatpush1.xpose.msra.mxu0 0.0
        %1294 = vmatprep.subr.mxu0 0.0
        %1295 = vmatpush1.xpose.msra.mxu0 0.0
        %1296 = vmatprep.subr.mxu0 0.0
        %1297 = vmatpush1.xpose.msra.mxu0 0.0
        %1298 = vmatprep.subr.mxu0 0.0
        %1299 = vmatpush1.xpose.msra.mxu0 0.0
        %1300 = vmatprep.subr.mxu0 0.0
        %1301 = vmatpush1.xpose.msra.mxu0 0.0
        %1302 = vmatprep.subr.mxu0 0.0
        %1303 = vmatpush1.xpose.msra.mxu0 0.0
        %1304 = vmatprep.subr.mxu0 0.0
        %1305 = vmatpush1.xpose.msra.mxu0 0.0
        %1306 = vmatprep.subr.mxu0 0.0
        %1307 = vmatpush1.xpose.msra.mxu0 0.0
        %1308 = vmatprep.subr.mxu0 0.0
        %1309 = vmatpush1.xpose.msra.mxu0 0.0
        %1310 = vmatprep.subr.mxu0 0.0
        %1311 = vmatpush1.xpose.msra.mxu0 0.0
        %1312 = vmatprep.subr.mxu0 0.0
        %1313 = vmatpush1.xpose.msra.mxu0 0.0
        %1314 = vmatprep.subr.mxu0 0.0
        %1315 = vmatpush1.xpose.msra.mxu0 0.0
        %1316 = vmatprep.subr.mxu0 0.0
        %1317 = vmatpush1.xpose.msra.mxu0 0.0
        %1318 = vmatprep.subr.mxu0 0.0
        %1319 = vmatpush1.xpose.msra.mxu0 0.0
        %1320 = vmatprep.subr.mxu0 0.0
        %1321 = vmatpush1.xpose.msra.mxu0 0.0
        %1322 = vmatprep.subr.mxu0 0.0
        %1323 = vmatpush1.xpose.msra.mxu0 0.0
        %1324 = vmatprep.subr.mxu0 0.0
        %1325 = vmatpush1.xpose.msra.mxu0 0.0
        %1326 = vmatprep.subr.mxu0 0.0
        %1327 = vmatpush1.xpose.msra.mxu0 0.0
        %1328 = vmatprep.subr.mxu0 0.0
        %1329 = vmatpush1.xpose.msra.mxu0 0.0
        %1330 = vmatprep.subr.mxu0 0.0
        %1331 = vmatpush1.xpose.msra.mxu0 0.0
        %1332 = vmatprep.subr.mxu0 0.0
        %1333 = vmatpush1.xpose.msra.mxu0 0.0
        %1334 = vmatprep.subr.mxu0 0.0
        %1335 = vmatpush1.xpose.msra.mxu0 0.0
        %1336 = vmatprep.subr.mxu0 0.0
        %1337 = vmatpush1.xpose.msra.mxu0 0.0
        %1338 = vmatprep.subr.mxu0 0.0
        %1339 = vmatpush1.xpose.msra.mxu0 0.0
        %1340 = vmatprep.subr.mxu0 0.0
        %1341 = vmatpush1.xpose.msra.mxu0 0.0
        %1342 = vmatprep.subr.mxu0 0.0
        %1343 = vmatpush1.xpose.msra.mxu0 0.0
        %1344 = vmatprep.subr.mxu0 0.0
        %1345 = vmatpush1.xpose.msra.mxu0 0.0
        %1346 = vmatprep.mubr.f32.mxu0 0.0
        %1347 = vmatmul.mubr.f32.gmra.mrb[0].mxu0 %v1278
        %v1348 = vpop.f32.mrb[0].mxu0
        %v1349 = vadd.f32 0.0, %v1348
        %v1350 = vpop.f32.mrb[0].mxu0
        %1351 = vdwg.mxu0
        %v1352 = vsel %vm779, %v1349, -inf
        %1353 = vmax.xlane.f32.xlu0 %v1352
        %v1354 = vpop.xlane.xlu0 %1353
        %v1355 = vsub.f32 %v1349, %v1354
        %v1356 = vmul.f32 %v1355, 1.442695
        %v1357 = vpow.pop %v1356
        %v1358 = vsel %vm779, %v1357, 0.0
        %1359 = vadd.xlane.f32.xlu0 %v1358
        %v1360 = vpop.xlane.xlu0 %1359
        %v1361 = vrcp.pop %v1360
        %v1362 = vmul.f32 %v1357, %v1361
        %v1363 = vadd.f32 %v1197, %v1362
        %1364 = vrot.lane.b32.xlu0 %v778, 104
        %v1365 = vpop.permute.xlu0 %1364
        %v1368 = vsel %vm779, %v1362, 0
        %1370 = vmatprep.subr.mxu0 0.0
        %1371 = vmatpush1.msra.mxu0 %v1365
        %1372 = vmatprep.subr.mxu0 0.0
        %1373 = vmatpush1.msra.mxu0 0.0
        %1374 = vmatprep.subr.mxu0 0.0
        %1375 = vmatpush1.msra.mxu0 0.0
        %1376 = vmatprep.subr.mxu0 0.0
        %1377 = vmatpush1.msra.mxu0 0.0
        %1378 = vmatprep.subr.mxu0 0.0
        %1379 = vmatpush1.msra.mxu0 0.0
        %1380 = vmatprep.subr.mxu0 0.0
        %1381 = vmatpush1.msra.mxu0 0.0
        %1382 = vmatprep.subr.mxu0 0.0
        %1383 = vmatpush1.msra.mxu0 0.0
        %1384 = vmatprep.subr.mxu0 0.0
        %1385 = vmatpush1.msra.mxu0 0.0
        %1386 = vmatprep.subr.mxu0 0.0
        %1387 = vmatpush1.msra.mxu0 0.0
        %1388 = vmatprep.subr.mxu0 0.0
        %1389 = vmatpush1.msra.mxu0 0.0
        %1390 = vmatprep.subr.mxu0 0.0
        %1391 = vmatpush1.msra.mxu0 0.0
        %1392 = vmatprep.subr.mxu0 0.0
        %1393 = vmatpush1.msra.mxu0 0.0
        %1394 = vmatprep.subr.mxu0 0.0
        %1395 = vmatpush1.msra.mxu0 0.0
        %1396 = vmatprep.subr.mxu0 0.0
        %1397 = vmatpush1.msra.mxu0 0.0
        %1398 = vmatprep.subr.mxu0 0.0
        %1399 = vmatpush1.msra.mxu0 0.0
        %1400 = vmatprep.subr.mxu0 0.0
        %1401 = vmatpush1.msra.mxu0 0.0
        %1402 = vmatprep.subr.mxu0 0.0
        %1403 = vmatpush1.msra.mxu0 0.0
        %1404 = vmatprep.subr.mxu0 0.0
        %1405 = vmatpush1.msra.mxu0 0.0
        %1406 = vmatprep.subr.mxu0 0.0
        %1407 = vmatpush1.msra.mxu0 0.0
        %1408 = vmatprep.subr.mxu0 0.0
        %1409 = vmatpush1.msra.mxu0 0.0
        %1410 = vmatprep.subr.mxu0 0.0
        %1411 = vmatpush1.msra.mxu0 0.0
        %1412 = vmatprep.subr.mxu0 0.0
        %1413 = vmatpush1.msra.mxu0 0.0
        %1414 = vmatprep.subr.mxu0 0.0
        %1415 = vmatpush1.msra.mxu0 0.0
        %1416 = vmatprep.subr.mxu0 0.0
        %1417 = vmatpush1.msra.mxu0 0.0
        %1418 = vmatprep.subr.mxu0 0.0
        %1419 = vmatpush1.msra.mxu0 0.0
        %1420 = vmatprep.subr.mxu0 0.0
        %1421 = vmatpush1.msra.mxu0 0.0
        %1422 = vmatprep.subr.mxu0 0.0
        %1423 = vmatpush1.msra.mxu0 0.0
        %1424 = vmatprep.subr.mxu0 0.0
        %1425 = vmatpush1.msra.mxu0 0.0
        %1426 = vmatprep.subr.mxu0 0.0
        %1427 = vmatpush1.msra.mxu0 0.0
        %1428 = vmatprep.subr.mxu0 0.0
        %1429 = vmatpush1.msra.mxu0 0.0
        %1430 = vmatprep.subr.mxu0 0.0
        %1431 = vmatpush1.msra.mxu0 0.0
        %1432 = vmatprep.subr.mxu0 0.0
        %1433 = vmatpush1.msra.mxu0 0.0
        %1434 = vmatprep.mubr.f32.mxu0 0.0
        %1435 = vmatmul.mubr.f32.gmra.mrb[0].mxu0 %v1368
        %v1436 = vpop.f32.mrb[0].mxu0
        %v1437 = vadd.f32 0.0, %v1436
        %v1438 = vpop.f32.mrb[0].mxu0
        %1439 = vdwg.mxu0
        %1441 = vrot.lane.b32.xlu0 %v1105, 8
        %v1442 = vpop.permute.xlu0 %1441
        %1445 = vrot.lane.b32.xlu0 %v1271, 16
        %v1446 = vpop.permute.xlu0 %1445
        %1449 = vrot.lane.b32.xlu0 %v1437, 24
        %v1450 = vpop.permute.xlu0 %1449
        %v1452 = vsel %vm779, %v938, %v1442
        %vm1453 = vcmask 130048
        %v1454 = vsel %vm1453, %v1452, %v1446
        %vm1455 = vcmask 195584
        %v1456 = vsel %vm1455, %v1454, %v1450
        %v1457 = vld [vmem:[#allocation15] sm:$0xff]
        %v1458 = vld [vmem:[#allocation15 + $0x8] sm:$0xff]
        %v1459 = vld [vmem:[#allocation15 + $0x10] sm:$0xff]
        %v1460 = vld [vmem:[#allocation15 + $0x18] sm:$0xff]
        %v1462 = vsel %vm702, %v1456, 0
        %1464 = vmatprep.subr.mxu0 0.0
        %1465 = vmatpush1.msra.mxu0 %v1457
        %1466 = vmatprep.subr.mxu0 0.0
        %1467 = vmatpush1.msra.mxu0 %v1458
        %1468 = vmatprep.subr.mxu0 0.0
        %1469 = vmatpush1.msra.mxu0 %v1459
        %1470 = vmatprep.subr.mxu0 0.0
        %1471 = vmatpush1.msra.mxu0 %v1460
        %1472 = vmatprep.subr.mxu0 0.0
        %1473 = vmatpush1.msra.mxu0 0.0
        %1474 = vmatprep.subr.mxu0 0.0
        %1475 = vmatpush1.msra.mxu0 0.0
        %1476 = vmatprep.subr.mxu0 0.0
        %1477 = vmatpush1.msra.mxu0 0.0
        %1478 = vmatprep.subr.mxu0 0.0
        %1479 = vmatpush1.msra.mxu0 0.0
        %1480 = vmatprep.subr.mxu0 0.0
        %1481 = vmatpush1.msra.mxu0 0.0
        %1482 = vmatprep.subr.mxu0 0.0
        %1483 = vmatpush1.msra.mxu0 0.0
        %1484 = vmatprep.subr.mxu0 0.0
        %1485 = vmatpush1.msra.mxu0 0.0
        %1486 = vmatprep.subr.mxu0 0.0
        %1487 = vmatpush1.msra.mxu0 0.0
        %1488 = vmatprep.subr.mxu0 0.0
        %1489 = vmatpush1.msra.mxu0 0.0
        %1490 = vmatprep.subr.mxu0 0.0
        %1491 = vmatpush1.msra.mxu0 0.0
        %1492 = vmatprep.subr.mxu0 0.0
        %1493 = vmatpush1.msra.mxu0 0.0
        %1494 = vmatprep.subr.mxu0 0.0
        %1495 = vmatpush1.msra.mxu0 0.0
        %1496 = vmatprep.subr.mxu0 0.0
        %1497 = vmatpush1.msra.mxu0 0.0
        %1498 = vmatprep.subr.mxu0 0.0
        %1499 = vmatpush1.msra.mxu0 0.0
        %1500 = vmatprep.subr.mxu0 0.0
        %1501 = vmatpush1.msra.mxu0 0.0
        %1502 = vmatprep.subr.mxu0 0.0
        %1503 = vmatpush1.msra.mxu0 0.0
        %1504 = vmatprep.subr.mxu0 0.0
        %1505 = vmatpush1.msra.mxu0 0.0
        %1506 = vmatprep.subr.mxu0 0.0
        %1507 = vmatpush1.msra.mxu0 0.0
        %1508 = vmatprep.subr.mxu0 0.0
        %1509 = vmatpush1.msra.mxu0 0.0
        %1510 = vmatprep.subr.mxu0 0.0
        %1511 = vmatpush1.msra.mxu0 0.0
        %1512 = vmatprep.subr.mxu0 0.0
        %1513 = vmatpush1.msra.mxu0 0.0
        %1514 = vmatprep.subr.mxu0 0.0
        %1515 = vmatpush1.msra.mxu0 0.0
        %1516 = vmatprep.subr.mxu0 0.0
        %1517 = vmatpush1.msra.mxu0 0.0
        %1518 = vmatprep.subr.mxu0 0.0
        %1519 = vmatpush1.msra.mxu0 0.0
        %1520 = vmatprep.subr.mxu0 0.0
        %1521 = vmatpush1.msra.mxu0 0.0
        %1522 = vmatprep.subr.mxu0 0.0
        %1523 = vmatpush1.msra.mxu0 0.0
        %1524 = vmatprep.subr.mxu0 0.0
        %1525 = vmatpush1.msra.mxu0 0.0
        %1526 = vmatprep.subr.mxu0 0.0
        %1527 = vmatpush1.msra.mxu0 0.0
        %1528 = vmatprep.mubr.f32.mxu0 0.0
        %1529 = vmatmul.mubr.f32.gmra.mrb[0].mxu0 %v1462
        %v1530 = vpop.f32.mrb[0].mxu0
        %v1531 = vadd.f32 0.0, %v1530
        %v1532 = vpop.f32.mrb[0].mxu0
        %1533 = vdwg.mxu0
        %v1534 = vsel %vm702, %v1531, 0.0
        %1535 = vadd.xlane.f32.xlu0 %v1534
        %v1536 = vpop.xlane.xlu0 %1535
        %v1537 = vrcp.pop 32.0
        %v1538 = vmul.f32 %v1536, %v1537
        %v1539 = vsub.f32 %v1531, %v1538
        %v1540 = vmul.f32 %v1539, %v1539
        %v1541 = vsel %vm702, %v1540, 0.0
        %1542 = vadd.xlane.f32.xlu0 %v1541
        %v1543 = vpop.xlane.xlu0 %1542
        %v1544 = vmul.f32 %v1543, %v1537
        %v1545 = vadd.f32 %v1544, 1e-06
        %v1546 = vrsqrt.pop %v1545
        %v1547 = vmul.f32 %v1539, %v1546
        %v1548 = vld [vmem:[%s7] sm:$0x1]
        %v1550 = vlaneseq
        %v1551 = vshrl.u32 %v1550, 7
        %v1552 = vsub.s32 0, %v1551
        %v1553 = vrot.slane %v1548, %v1552
        %v1555 = vmul.f32 %v1547, %v1553
        %v1556 = vld [vmem:[%s8] sm:$0x1]
        %v1558 = vlaneseq
        %v1559 = vshrl.u32 %v1558, 7
        %v1560 = vsub.s32 0, %v1559
        %v1561 = vrot.slane %v1556, %v1560
        %v1563 = vadd.f32 %v1555, %v1561
        %1564 = vst.msk [vmem:[%s526] sm:$0xff] %vm702, %v1563
        %v1565 = vmul.f32 %v1363, 0.25
        %1566 = vst.msk [vmem:[%s533] sm:$0xff] %vm779, %v1565
        %s1567 = sand.u32 %s264, 1
        %s1568 = scalar_lea.sflag [#allocation6], %s1567
        %s1569 = sand.u32 %s264, 1
        %s1570 = smul.addr %s1569, 8
        %s1571 = scalar_lea.vmem [#allocation16], %s1570
        %s1572 = sand.u32 %s292, 1
        %s1573 = scalar_lea.sflag [#allocation18], %s1572
        %s1574 = sand.u32 %s292, 1
        %s1575 = smul.addr %s1574, 8
        %s1576 = scalar_lea.vmem [#allocation17], %s1575
        // Predicated region
        $region89: #{tpu_custom_call.1} parent=55 // pred_check
          %p1577 = pneg %p274
        $region90: #{tpu_custom_call.1} parent=55 // pred_check_branch
          %1579 = sbr.rel (%p1577) target = $region92
        $region91: #{tpu_custom_call.1} parent=55 // pred_region
          %s1581 = ssub.s32 128, 128
          %1582 = vsyncadd %s1568, %s1581
          %s1583 = sadd.s32 %s41, %s40
          %s1584 = smul.addr %s1583, 128
          %s1585 = scalar_lea.hbm %s9, %s1584
          %s1587 = sshll.u32 %s1571, 4
          %s1588 = int_to_ptr.vmem [resolvable:$true] %s1587
          %1590 = dma.vmem_to_hbm [thread:$0]  %s1588, 128, %s1585, %s1568
        $region92: #{tpu_custom_call.1} parent=55 // pred_fallthru
          _
        // Predicated region
        $region93: #{tpu_custom_call.1} parent=55 // pred_check
          %p1591 = pneg %p302
        $region94: #{tpu_custom_call.1} parent=55 // pred_check_branch
          %1593 = sbr.rel (%p1591) target = $region96
        $region95: #{tpu_custom_call.1} parent=55 // pred_region
          %s1595 = ssub.s32 128, 128
          %1596 = vsyncadd %s1573, %s1595
          %s1597 = sadd.s32 %s41, %s40
          %s1598 = smul.addr %s1597, 128
          %s1599 = scalar_lea.hbm %s10, %s1598
          %s1601 = sshll.u32 %s1576, 4
          %s1602 = int_to_ptr.vmem [resolvable:$true] %s1601
          %1604 = dma.vmem_to_hbm [thread:$0]  %s1602, 128, %s1599, %s1573
        $region96: #{tpu_custom_call.1} parent=55 // pred_fallthru
          _
      $region56: #{tpu_custom_call.1} parent=5 // pred_fallthru
        _
      %p1605 = scmp.le.s32.totalorder 2, %s31
      // Predicated region
      $region97: #{tpu_custom_call.1} parent=5 // pred_check
        %p1606 = pneg %p1605
      $region98: #{tpu_custom_call.1} parent=5 // pred_check_branch
        %1608 = sbr.rel (%p1606) target = $region100
      $region99: #{tpu_custom_call.1} parent=5 // pred_region
        %s1609 = ssub.s32 %s31, 2
        // Predicated region
        $region101: #{tpu_custom_call.1} parent=99 // pred_check
          %p1610 = pneg %p280
        $region102: #{tpu_custom_call.1} parent=99 // pred_check_branch
          %1612 = sbr.rel (%p1610) target = $region104
        $region103: #{tpu_custom_call.1} parent=99 // pred_region
          %s1613 = sand.u32 %s265, 1
          %s1614 = scalar_lea.sflag [#allocation6], %s1613
          %s1615 = sand.u32 %s265, 1
          %s1616 = smul.addr %s1615, 8
          %s1617 = scalar_lea.vmem [#allocation16], %s1616
          %1618 = dma.done %s1614, 128
        $region104: #{tpu_custom_call.1} parent=99 // pred_fallthru
          _
        // Predicated region
        $region105: #{tpu_custom_call.1} parent=99 // pred_check
          %p1619 = pneg %p308
        $region106: #{tpu_custom_call.1} parent=99 // pred_check_branch
          %1621 = sbr.rel (%p1619) target = $region108
        $region107: #{tpu_custom_call.1} parent=99 // pred_region
          %s1622 = sand.u32 %s293, 1
          %s1623 = scalar_lea.sflag [#allocation18], %s1622
          %s1624 = sand.u32 %s293, 1
          %s1625 = smul.addr %s1624, 8
          %s1626 = scalar_lea.vmem [#allocation17], %s1625
          %1627 = dma.done %s1623, 128
        $region108: #{tpu_custom_call.1} parent=99 // pred_fallthru
          _
      $region100: #{tpu_custom_call.1} parent=5 // pred_fallthru
        _
    $region6: #{tpu_custom_call.1} parent=1 // loop_footer
      %s35 = sadd.s32 1, %s31
    $region7: #{tpu_custom_call.1} parent=1 // loop_footer_branch
      %30 = sbr.rel target = $region3
    $region8: #{tpu_custom_call.1} parent=1 // loop_exit
      _
    %1628 = vsyncpa [#allocation5], 1
    %s1629 = scalar_lea.sflag [#allocation5], 1
    %1630 = vsyncpa %s1629, 1
    %1631 = vsyncpa [#allocation8], 1
    %s1632 = scalar_lea.sflag [#allocation8], 1
    %1633 = vsyncpa %s1632, 1
    %1634 = vsyncpa [#allocation11], 1
    %1635 = vsyncpa [#allocation14], 1
    %1636 = vsyncpa [#allocation6], 1
    %s1637 = scalar_lea.sflag [#allocation6], 1
    %1638 = vsyncpa %s1637, 1
    %1639 = vsyncpa [#allocation18], 1
    %s1640 = scalar_lea.sflag [#allocation18], 1
    %1641 = vsyncpa %s1640, 1

</llo_original>
